<compile_context>
chip_gen: v6e
topology: v6e:2x2x1
jax: 0.10.0
libtpu: 0.0.40
codegen_flags: <defaults>
</compile_context>

<pallas_src>
import functools
import math

import jax
import jax.numpy as jnp
import numpy as np
from jax import lax
from jax.experimental import pallas as pl
from jax.experimental.pallas import tpu as pltpu


def _smha_kernel(x_ref, wcat_ref, b_ref, wo_ref, bo_ref, bias_ref, out_ref,
                 *, num_heads, head_dim, n_it, eps, scale):
    """One grid step = one batch element; all heads processed as a stacked batch."""
    H, D = num_heads, head_dim
    T = x_ref.shape[1]
    E = x_ref.shape[2]

    x = x_ref[0]                                                         # (T, E) bf16

    # ---- fused q|v projection: single (T,E)x(E,2E) GEMM, weights pre-transposed ----
    qv = jnp.dot(x, wcat_ref[...], preferred_element_type=jnp.float32)   # (T, 2E) f32
    q = qv[:, :E] + b_ref[...]                                           # (T, E)  (k == q)
    v = qv[:, E:]                                                        # (T, E)

    # ---- head-stacked layout (H, T, D): batches heads for a single batched matmul ----
    qh = jnp.stack([q[:, h * D:(h + 1) * D] for h in range(H)], axis=0).astype(jnp.bfloat16)
    vh = jnp.stack([v[:, h * D:(h + 1) * D] for h in range(H)], axis=0).astype(jnp.bfloat16)

    # scores for all heads at once: (H,T,D) x (H,T,D) -> (H,T,T), bf16 in / f32 acc
    s = lax.dot_general(qh, qh, dimension_numbers=(((2,), (2,)), ((0,), (0,))),
                        preferred_element_type=jnp.float32)
    s = s * scale + bias_ref[0]                                          # (H, T, T) f32

    # ---- log-domain Sinkhorn, uniform marginals, eps folded in statically ----
    Sn = s if eps == 1.0 else s * (1.0 / eps)                            # = -C/eps
    SnT = jnp.swapaxes(Sn, 1, 2)        # one transpose, amortized over n_it iterations
    logm = -math.log(T)                 # log(1/T) for both marginals

    def lse_rows(m):                    # logsumexp over the last (lane) axis -> (H, T)
        mx = jnp.max(m, axis=-1)
        return mx + jnp.log(jnp.sum(jnp.exp(m - mx[..., None]), axis=-1))

    def body(_, carry):
        u, vv = carry                                    # (H, T) each (already /eps)
        u = logm - lse_rows(Sn + vv[:, None, :])         # row update    (lane reduce)
        vv = logm - lse_rows(SnT + u[:, None, :])        # column update (lane reduce on SnT)
        return u, vv

    z = jnp.zeros((H, T), jnp.float32)
    u, vv = lax.fori_loop(0, n_it, body, (z, z), unroll=True)

    # transport plan, scaled by src_len (rows of pi sum to ~1/T)
    attn = jnp.exp(Sn + u[:, :, None] + vv[:, None, :]) * jnp.float32(T)  # (H, T, T)

    # ---- attn @ v for all heads at once: (H,T,T) x (H,T,D) -> (H,T,D) ----
    oh = lax.dot_general(attn.astype(jnp.bfloat16), vh,
                         dimension_numbers=(((2,), (1,)), ((0,), (0,))),
                         preferred_element_type=jnp.float32)

    # merge heads back to (T, E) and apply out_proj (pre-transposed Wo)
    o = jnp.concatenate([oh[h] for h in range(H)], axis=-1)               # (T, E)
    out = jnp.dot(o.astype(jnp.bfloat16), wo_ref[...],
                  preferred_element_type=jnp.float32) + bo_ref[...]
    out_ref[0] = out


@functools.partial(jax.jit, static_argnames=("num_heads", "n_it", "eps", "scaling_factor"))
def self_multihead_attention(x, W, b, Wo, bo, attn_bias, *, num_heads, n_it,
                             eps=1.0, scaling_factor=1):
    bsz, T, E = x.shape
    H = num_heads
    D = E // H
    assert D * H == E

    f32 = jnp.float32
    bf16 = jnp.bfloat16

    # --- parameter-only glue, computed once in f32, fed to the MXU in bf16 ---
    Wt = W.T.astype(f32)                      # (E, E)  q/k projection (pre-transposed)
    nwwt = (-(W @ W.T)).astype(f32)           # (E, E)  v projection
    Wcat = jnp.concatenate([Wt, nwwt], axis=1).astype(bf16)   # (E, 2E) fused q|v weights
    Wo_t = Wo.T.astype(bf16)                  # (E, E)  pre-transposed out_proj
    b2 = b.reshape(1, E).astype(f32)
    bo2 = bo.reshape(1, E).astype(f32)

    bias4 = attn_bias.reshape(bsz, H, T, T).astype(f32)       # f32: adds to f32 scores
    x_bf = x.astype(bf16)

    # q * (D*sf)^-0.5 then scores / sqrt(D)  -> single combined scale on the scores
    scale = float((D * scaling_factor) ** -0.5 * D ** -0.5)

    kernel = functools.partial(_smha_kernel, num_heads=H, head_dim=D,
                               n_it=int(n_it), eps=float(eps), scale=scale)

    # advisory cost: the kernel is EUP/VPU heavy (Sinkhorn exps), not FLOP heavy
    flops = (2 * bsz * T * E * 2 * E          # fused projection
             + 4 * bsz * H * T * T * D        # QK^T + attn@V
             + 2 * bsz * T * E * E)           # out_proj
    transcendentals = bsz * H * T * (T * (2 * n_it + 1) + 2 * n_it)
    bytes_accessed = (x_bf.size * 2 + Wcat.size * 2 + b2.size * 4 + Wo_t.size * 2
                      + bo2.size * 4 + bias4.size * 4 + bsz * T * E * 4)

    return pl.pallas_call(
        kernel,
        out_shape=jax.ShapeDtypeStruct((bsz, T, E), jnp.float32),
        grid_spec=pltpu.PrefetchScalarGridSpec(
            num_scalar_prefetch=0,
            grid=(bsz,),
            in_specs=[
                pl.BlockSpec((1, T, E), lambda i: (i, 0, 0)),        # x (bf16)
                pl.BlockSpec((E, 2 * E), lambda i: (0, 0)),          # [W.T | -(W W^T)] (bf16)
                pl.BlockSpec((1, E), lambda i: (0, 0)),              # b
                pl.BlockSpec((E, E), lambda i: (0, 0)),              # Wo.T (bf16)
                pl.BlockSpec((1, E), lambda i: (0, 0)),              # bo
                pl.BlockSpec((1, H, T, T), lambda i: (i, 0, 0, 0)),  # attn_bias (f32)
            ],
            out_specs=pl.BlockSpec((1, T, E), lambda i: (i, 0, 0)),
        ),
        compiler_params=pltpu.CompilerParams(dimension_semantics=("parallel",)),
        cost_estimate=pl.CostEstimate(flops=int(flops),
                                      transcendentals=int(transcendentals),
                                      bytes_accessed=int(bytes_accessed)),
    )(x_bf, Wcat, b2, Wo_t, bo2, bias4)


def reference(x, W, b, Wo, bo, attn_bias, num_heads, n_it, eps=1.0, scaling_factor=1):
    """Pure-JAX f32 reference matching the PyTorch forward."""
    bsz, T, E = x.shape
    D = E // num_heads
    q = x @ W.T + b
    k = q
    v = x @ -(W @ W.T)

    def split(z):
        return z.reshape(bsz, T, num_heads, D).transpose(0, 2, 1, 3).reshape(bsz * num_heads, T, D)

    qh = split(q) * ((D * scaling_factor) ** -0.5)
    kh = split(k)
    vh = split(v)
    s = jnp.einsum('bqd,bkd->bqk', qh, kh) / (D ** 0.5) + attn_bias
    C = -s
    u = jnp.zeros((bsz * num_heads, T), jnp.float32)
    vv = jnp.zeros((bsz * num_heads, T), jnp.float32)
    logm = -jnp.log(jnp.float32(T))
    for _ in range(n_it):
        M = (-C + u[:, :, None] + vv[:, None, :]) / eps
        u = eps * (logm - jax.scipy.special.logsumexp(M, axis=-1)) + u
        M = (-C + u[:, :, None] + vv[:, None, :]) / eps
        vv = eps * (logm - jax.scipy.special.logsumexp(M, axis=-2)) + vv
    pi = jnp.exp((-C + u[:, :, None] + vv[:, None, :]) / eps)
    attn = pi * T
    o = jnp.einsum('bqk,bkd->bqd', attn, vh)
    o = o.reshape(bsz, num_heads, T, D).transpose(0, 2, 1, 3).reshape(bsz, T, E)
    return o @ Wo.T + bo


if __name__ == "__main__":
    bsz, T, E, H = 2, 8, 32, 4
    n_it = 3

    key = jax.random.PRNGKey(0)
    k1, k2, k3, k4, k5, k6 = jax.random.split(key, 6)
    lim = 1.0 / (E ** 0.5)
    x = jax.random.normal(k1, (bsz, T, E), jnp.float32)
    W = jax.random.uniform(k2, (E, E), jnp.float32, -lim, lim)
    b = jax.random.uniform(k3, (E,), jnp.float32, -lim, lim)
    Wo = jax.random.uniform(k4, (E, E), jnp.float32, -lim, lim)
    bo = jax.random.uniform(k5, (E,), jnp.float32, -lim, lim)
    attn_bias = 0.1 * jax.random.normal(k6, (bsz * H, T, T), jnp.float32)

    out = self_multihead_attention(x, W, b, Wo, bo, attn_bias, num_heads=H, n_it=n_it)
    out = jax.block_until_ready(out)

    ref = reference(x, W, b, Wo, bo, attn_bias, num_heads=H, n_it=n_it)
    # Tolerance accounts for bf16 MXU inputs (f32 accumulation) vs the full-f32 reference.
    np.testing.assert_allclose(np.asarray(out), np.asarray(ref), rtol=5e-2, atol=5e-2)

    print("KERNEL_OK")
</pallas_src>

<mosaic_0001>
module attributes {stable_mosaic.version = 11 : i64} {
  func.func @_smha_kernel(%arg0: i32, %arg1: memref<1x8x32xbf16, #tpu.memory_space<vmem>>, %arg2: memref<32x64xbf16, #tpu.memory_space<vmem>>, %arg3: memref<1x32xf32, #tpu.memory_space<vmem>>, %arg4: memref<32x32xbf16, #tpu.memory_space<vmem>>, %arg5: memref<1x32xf32, #tpu.memory_space<vmem>>, %arg6: memref<1x4x8x8xf32, #tpu.memory_space<vmem>>, %arg7: memref<1x8x32xf32, #tpu.memory_space<vmem>>) attributes {dimension_semantics = [#tpu.dimension_semantics<parallel>], iteration_bounds = array<i64: 2>, scalar_prefetch = 0 : i64, scratch_operands = 0 : i64, tpu.core_type = #tpu.core_type<tc>, window_params = [{transform_indices = @transform_0, window_bounds = array<i64: 1, 8, 32>}, {pipeline_mode = #tpu.pipeline_mode<synchronous>, transform_indices = @transform_1, window_bounds = array<i64: 32, 64>}, {pipeline_mode = #tpu.pipeline_mode<synchronous>, transform_indices = @transform_2, window_bounds = array<i64: 1, 32>}, {pipeline_mode = #tpu.pipeline_mode<synchronous>, transform_indices = @transform_3, window_bounds = array<i64: 32, 32>}, {pipeline_mode = #tpu.pipeline_mode<synchronous>, transform_indices = @transform_4, window_bounds = array<i64: 1, 32>}, {transform_indices = @transform_5, window_bounds = array<i64: 1, 4, 8, 8>}, {transform_indices = @transform_6, window_bounds = array<i64: 1, 8, 32>}]} {
    %c0 = arith.constant 0 : index
    %c0_0 = arith.constant 0 : index
    %c0_1 = arith.constant 0 : index
    %0 = vector.load %arg1[%c0, %c0_0, %c0_1] : memref<1x8x32xbf16, #tpu.memory_space<vmem>>, vector<1x8x32xbf16>
    %1 = vector.shape_cast %0 : vector<1x8x32xbf16> to vector<8x32xbf16>
    %c0_2 = arith.constant 0 : index
    %c0_3 = arith.constant 0 : index
    %2 = vector.load %arg2[%c0_2, %c0_3] : memref<32x64xbf16, #tpu.memory_space<vmem>>, vector<32x64xbf16>
    %cst = arith.constant dense<0.000000e+00> : vector<8x64xf32>
    %3 = tpu.matmul %1, %2, %cst {dimension_numbers = #tpu.dot_dimension_numbers<[1], [0], [0], [1], [0, 0, 1, 1], [], []>} : vector<8x32xbf16>, vector<32x64xbf16>, vector<8x64xf32> -> vector<8x64xf32>
    %4 = vector.extract_strided_slice %3 {offsets = [0, 0], sizes = [8, 32], strides = [1, 1]} : vector<8x64xf32> to vector<8x32xf32>
    %c0_4 = arith.constant 0 : index
    %c0_5 = arith.constant 0 : index
    %5 = vector.load %arg3[%c0_4, %c0_5] : memref<1x32xf32, #tpu.memory_space<vmem>>, vector<1x32xf32>
    %6 = vector.broadcast %5 : vector<1x32xf32> to vector<8x32xf32>
    %7 = arith.addf %4, %6 : vector<8x32xf32>
    %8 = vector.extract_strided_slice %3 {offsets = [0, 32], sizes = [8, 32], strides = [1, 1]} : vector<8x64xf32> to vector<8x32xf32>
    %9 = vector.extract_strided_slice %7 {offsets = [0, 0], sizes = [8, 8], strides = [1, 1]} : vector<8x32xf32> to vector<8x8xf32>
    %10 = vector.extract_strided_slice %7 {offsets = [0, 8], sizes = [8, 8], strides = [1, 1]} : vector<8x32xf32> to vector<8x8xf32>
    %11 = vector.extract_strided_slice %7 {offsets = [0, 16], sizes = [8, 8], strides = [1, 1]} : vector<8x32xf32> to vector<8x8xf32>
    %12 = vector.extract_strided_slice %7 {offsets = [0, 24], sizes = [8, 8], strides = [1, 1]} : vector<8x32xf32> to vector<8x8xf32>
    %13 = vector.shape_cast %9 : vector<8x8xf32> to vector<1x8x8xf32>
    %14 = vector.shape_cast %10 : vector<8x8xf32> to vector<1x8x8xf32>
    %15 = vector.shape_cast %11 : vector<8x8xf32> to vector<1x8x8xf32>
    %16 = vector.shape_cast %12 : vector<8x8xf32> to vector<1x8x8xf32>
    %17 = tpu.concatenate %13, %14, %15, %16 in 0 : vector<1x8x8xf32>, vector<1x8x8xf32>, vector<1x8x8xf32>, vector<1x8x8xf32> -> vector<4x8x8xf32>
    %18 = arith.truncf %17 : vector<4x8x8xf32> to vector<4x8x8xbf16>
    %19 = vector.extract_strided_slice %8 {offsets = [0, 0], sizes = [8, 8], strides = [1, 1]} : vector<8x32xf32> to vector<8x8xf32>
    %20 = vector.extract_strided_slice %8 {offsets = [0, 8], sizes = [8, 8], strides = [1, 1]} : vector<8x32xf32> to vector<8x8xf32>
    %21 = vector.extract_strided_slice %8 {offsets = [0, 16], sizes = [8, 8], strides = [1, 1]} : vector<8x32xf32> to vector<8x8xf32>
    %22 = vector.extract_strided_slice %8 {offsets = [0, 24], sizes = [8, 8], strides = [1, 1]} : vector<8x32xf32> to vector<8x8xf32>
    %23 = vector.shape_cast %19 : vector<8x8xf32> to vector<1x8x8xf32>
    %24 = vector.shape_cast %20 : vector<8x8xf32> to vector<1x8x8xf32>
    %25 = vector.shape_cast %21 : vector<8x8xf32> to vector<1x8x8xf32>
    %26 = vector.shape_cast %22 : vector<8x8xf32> to vector<1x8x8xf32>
    %27 = tpu.concatenate %23, %24, %25, %26 in 0 : vector<1x8x8xf32>, vector<1x8x8xf32>, vector<1x8x8xf32>, vector<1x8x8xf32> -> vector<4x8x8xf32>
    %28 = arith.truncf %27 : vector<4x8x8xf32> to vector<4x8x8xbf16>
    %cst_6 = arith.constant dense<0.000000e+00> : vector<4x8x8xf32>
    %29 = tpu.matmul %18, %18, %cst_6 {dimension_numbers = #tpu.dot_dimension_numbers<[2], [2], [1], [1], [0, 0, 0, 1, 1, 1], [0], [0]>} : vector<4x8x8xbf16>, vector<4x8x8xbf16>, vector<4x8x8xf32> -> vector<4x8x8xf32>
    %cst_7 = arith.constant 1.250000e-01 : f32
    %30 = vector.broadcast %cst_7 : f32 to vector<4x8x8xf32>
    %31 = arith.mulf %29, %30 : vector<4x8x8xf32>
    %c0_8 = arith.constant 0 : index
    %c0_9 = arith.constant 0 : index
    %c0_10 = arith.constant 0 : index
    %c0_11 = arith.constant 0 : index
    %32 = vector.load %arg6[%c0_8, %c0_9, %c0_10, %c0_11] : memref<1x4x8x8xf32, #tpu.memory_space<vmem>>, vector<1x4x8x8xf32>
    %33 = vector.shape_cast %32 : vector<1x4x8x8xf32> to vector<4x8x8xf32>
    %34 = arith.addf %31, %33 : vector<4x8x8xf32>
    %35 = tpu.transpose %34, [0, 2, 1] : vector<4x8x8xf32> -> vector<4x8x8xf32>
    %cst_12 = arith.constant 0.000000e+00 : f32
    %36 = vector.broadcast %cst_12 : f32 to vector<4x8xf32>
    %c0_i32 = arith.constant 0 : i32
    %37 = vector.shape_cast %36 : vector<4x8xf32> to vector<4x1x8xf32>
    %38 = vector.broadcast %37 : vector<4x1x8xf32> to vector<4x8x8xf32>
    %39 = arith.addf %34, %38 : vector<4x8x8xf32>
    %cst_13 = arith.constant dense<0xFF800000> : vector<4x8xf32>
    %40 = vector.multi_reduction <maximumf>, %39, %cst_13 [2] : vector<4x8x8xf32> to vector<4x8xf32>
    %41 = vector.shape_cast %40 : vector<4x8xf32> to vector<4x8x1xf32>
    %42 = vector.broadcast %41 : vector<4x8x1xf32> to vector<4x8x8xf32>
    %43 = arith.subf %39, %42 : vector<4x8x8xf32>
    %44 = math.exp %43 : vector<4x8x8xf32>
    %cst_14 = arith.constant dense<0.000000e+00> : vector<4x8xf32>
    %45 = vector.multi_reduction <add>, %44, %cst_14 [2] : vector<4x8x8xf32> to vector<4x8xf32>
    %46 = math.log %45 : vector<4x8xf32>
    %47 = arith.addf %40, %46 : vector<4x8xf32>
    %cst_15 = arith.constant -2.07944155 : f32
    %48 = vector.broadcast %cst_15 : f32 to vector<4x8xf32>
    %49 = arith.subf %48, %47 : vector<4x8xf32>
    %50 = vector.shape_cast %49 : vector<4x8xf32> to vector<4x1x8xf32>
    %51 = vector.broadcast %50 : vector<4x1x8xf32> to vector<4x8x8xf32>
    %52 = arith.addf %35, %51 : vector<4x8x8xf32>
    %cst_16 = arith.constant dense<0xFF800000> : vector<4x8xf32>
    %53 = vector.multi_reduction <maximumf>, %52, %cst_16 [2] : vector<4x8x8xf32> to vector<4x8xf32>
    %54 = vector.shape_cast %53 : vector<4x8xf32> to vector<4x8x1xf32>
    %55 = vector.broadcast %54 : vector<4x8x1xf32> to vector<4x8x8xf32>
    %56 = arith.subf %52, %55 : vector<4x8x8xf32>
    %57 = math.exp %56 : vector<4x8x8xf32>
    %cst_17 = arith.constant dense<0.000000e+00> : vector<4x8xf32>
    %58 = vector.multi_reduction <add>, %57, %cst_17 [2] : vector<4x8x8xf32> to vector<4x8xf32>
    %59 = math.log %58 : vector<4x8xf32>
    %60 = arith.addf %53, %59 : vector<4x8xf32>
    %cst_18 = arith.constant -2.07944155 : f32
    %61 = vector.broadcast %cst_18 : f32 to vector<4x8xf32>
    %62 = arith.subf %61, %60 : vector<4x8xf32>
    %c1_i32 = arith.constant 1 : i32
    %63 = vector.shape_cast %62 : vector<4x8xf32> to vector<4x1x8xf32>
    %64 = vector.broadcast %63 : vector<4x1x8xf32> to vector<4x8x8xf32>
    %65 = arith.addf %34, %64 : vector<4x8x8xf32>
    %cst_19 = arith.constant dense<0xFF800000> : vector<4x8xf32>
    %66 = vector.multi_reduction <maximumf>, %65, %cst_19 [2] : vector<4x8x8xf32> to vector<4x8xf32>
    %67 = vector.shape_cast %66 : vector<4x8xf32> to vector<4x8x1xf32>
    %68 = vector.broadcast %67 : vector<4x8x1xf32> to vector<4x8x8xf32>
    %69 = arith.subf %65, %68 : vector<4x8x8xf32>
    %70 = math.exp %69 : vector<4x8x8xf32>
    %cst_20 = arith.constant dense<0.000000e+00> : vector<4x8xf32>
    %71 = vector.multi_reduction <add>, %70, %cst_20 [2] : vector<4x8x8xf32> to vector<4x8xf32>
    %72 = math.log %71 : vector<4x8xf32>
    %73 = arith.addf %66, %72 : vector<4x8xf32>
    %cst_21 = arith.constant -2.07944155 : f32
    %74 = vector.broadcast %cst_21 : f32 to vector<4x8xf32>
    %75 = arith.subf %74, %73 : vector<4x8xf32>
    %76 = vector.shape_cast %75 : vector<4x8xf32> to vector<4x1x8xf32>
    %77 = vector.broadcast %76 : vector<4x1x8xf32> to vector<4x8x8xf32>
    %78 = arith.addf %35, %77 : vector<4x8x8xf32>
    %cst_22 = arith.constant dense<0xFF800000> : vector<4x8xf32>
    %79 = vector.multi_reduction <maximumf>, %78, %cst_22 [2] : vector<4x8x8xf32> to vector<4x8xf32>
    %80 = vector.shape_cast %79 : vector<4x8xf32> to vector<4x8x1xf32>
    %81 = vector.broadcast %80 : vector<4x8x1xf32> to vector<4x8x8xf32>
    %82 = arith.subf %78, %81 : vector<4x8x8xf32>
    %83 = math.exp %82 : vector<4x8x8xf32>
    %cst_23 = arith.constant dense<0.000000e+00> : vector<4x8xf32>
    %84 = vector.multi_reduction <add>, %83, %cst_23 [2] : vector<4x8x8xf32> to vector<4x8xf32>
    %85 = math.log %84 : vector<4x8xf32>
    %86 = arith.addf %79, %85 : vector<4x8xf32>
    %cst_24 = arith.constant -2.07944155 : f32
    %87 = vector.broadcast %cst_24 : f32 to vector<4x8xf32>
    %88 = arith.subf %87, %86 : vector<4x8xf32>
    %c2_i32 = arith.constant 2 : i32
    %89 = vector.shape_cast %88 : vector<4x8xf32> to vector<4x1x8xf32>
    %90 = vector.broadcast %89 : vector<4x1x8xf32> to vector<4x8x8xf32>
    %91 = arith.addf %34, %90 : vector<4x8x8xf32>
    %cst_25 = arith.constant dense<0xFF800000> : vector<4x8xf32>
    %92 = vector.multi_reduction <maximumf>, %91, %cst_25 [2] : vector<4x8x8xf32> to vector<4x8xf32>
    %93 = vector.shape_cast %92 : vector<4x8xf32> to vector<4x8x1xf32>
    %94 = vector.broadcast %93 : vector<4x8x1xf32> to vector<4x8x8xf32>
    %95 = arith.subf %91, %94 : vector<4x8x8xf32>
    %96 = math.exp %95 : vector<4x8x8xf32>
    %cst_26 = arith.constant dense<0.000000e+00> : vector<4x8xf32>
    %97 = vector.multi_reduction <add>, %96, %cst_26 [2] : vector<4x8x8xf32> to vector<4x8xf32>
    %98 = math.log %97 : vector<4x8xf32>
    %99 = arith.addf %92, %98 : vector<4x8xf32>
    %cst_27 = arith.constant -2.07944155 : f32
    %100 = vector.broadcast %cst_27 : f32 to vector<4x8xf32>
    %101 = arith.subf %100, %99 : vector<4x8xf32>
    %102 = vector.shape_cast %101 : vector<4x8xf32> to vector<4x1x8xf32>
    %103 = vector.broadcast %102 : vector<4x1x8xf32> to vector<4x8x8xf32>
    %104 = arith.addf %35, %103 : vector<4x8x8xf32>
    %cst_28 = arith.constant dense<0xFF800000> : vector<4x8xf32>
    %105 = vector.multi_reduction <maximumf>, %104, %cst_28 [2] : vector<4x8x8xf32> to vector<4x8xf32>
    %106 = vector.shape_cast %105 : vector<4x8xf32> to vector<4x8x1xf32>
    %107 = vector.broadcast %106 : vector<4x8x1xf32> to vector<4x8x8xf32>
    %108 = arith.subf %104, %107 : vector<4x8x8xf32>
    %109 = math.exp %108 : vector<4x8x8xf32>
    %cst_29 = arith.constant dense<0.000000e+00> : vector<4x8xf32>
    %110 = vector.multi_reduction <add>, %109, %cst_29 [2] : vector<4x8x8xf32> to vector<4x8xf32>
    %111 = math.log %110 : vector<4x8xf32>
    %112 = arith.addf %105, %111 : vector<4x8xf32>
    %cst_30 = arith.constant -2.07944155 : f32
    %113 = vector.broadcast %cst_30 : f32 to vector<4x8xf32>
    %114 = arith.subf %113, %112 : vector<4x8xf32>
    %115 = vector.shape_cast %101 : vector<4x8xf32> to vector<4x8x1xf32>
    %116 = vector.broadcast %115 : vector<4x8x1xf32> to vector<4x8x8xf32>
    %117 = arith.addf %34, %116 : vector<4x8x8xf32>
    %118 = vector.shape_cast %114 : vector<4x8xf32> to vector<4x1x8xf32>
    %119 = vector.broadcast %118 : vector<4x1x8xf32> to vector<4x8x8xf32>
    %120 = arith.addf %117, %119 : vector<4x8x8xf32>
    %121 = math.exp %120 : vector<4x8x8xf32>
    %cst_31 = arith.constant 8.000000e+00 : f32
    %122 = vector.broadcast %cst_31 : f32 to vector<4x8x8xf32>
    %123 = arith.mulf %121, %122 : vector<4x8x8xf32>
    %124 = arith.truncf %123 : vector<4x8x8xf32> to vector<4x8x8xbf16>
    %cst_32 = arith.constant dense<0.000000e+00> : vector<4x8x8xf32>
    %125 = tpu.matmul %124, %28, %cst_32 {dimension_numbers = #tpu.dot_dimension_numbers<[2], [1], [1], [2], [0, 0, 0, 1, 1, 2], [0], [0]>} : vector<4x8x8xbf16>, vector<4x8x8xbf16>, vector<4x8x8xf32> -> vector<4x8x8xf32>
    %126 = vector.extract_strided_slice %125 {offsets = [0, 0, 0], sizes = [1, 8, 8], strides = [1, 1, 1]} : vector<4x8x8xf32> to vector<1x8x8xf32>
    %127 = vector.shape_cast %126 : vector<1x8x8xf32> to vector<8x8xf32>
    %128 = vector.extract_strided_slice %125 {offsets = [1, 0, 0], sizes = [1, 8, 8], strides = [1, 1, 1]} : vector<4x8x8xf32> to vector<1x8x8xf32>
    %129 = vector.shape_cast %128 : vector<1x8x8xf32> to vector<8x8xf32>
    %130 = vector.extract_strided_slice %125 {offsets = [2, 0, 0], sizes = [1, 8, 8], strides = [1, 1, 1]} : vector<4x8x8xf32> to vector<1x8x8xf32>
    %131 = vector.shape_cast %130 : vector<1x8x8xf32> to vector<8x8xf32>
    %132 = vector.extract_strided_slice %125 {offsets = [3, 0, 0], sizes = [1, 8, 8], strides = [1, 1, 1]} : vector<4x8x8xf32> to vector<1x8x8xf32>
    %133 = vector.shape_cast %132 : vector<1x8x8xf32> to vector<8x8xf32>
    %134 = tpu.concatenate %127, %129, %131, %133 in 1 : vector<8x8xf32>, vector<8x8xf32>, vector<8x8xf32>, vector<8x8xf32> -> vector<8x32xf32>
    %135 = arith.truncf %134 : vector<8x32xf32> to vector<8x32xbf16>
    %c0_33 = arith.constant 0 : index
    %c0_34 = arith.constant 0 : index
    %136 = vector.load %arg4[%c0_33, %c0_34] : memref<32x32xbf16, #tpu.memory_space<vmem>>, vector<32x32xbf16>
    %cst_35 = arith.constant dense<0.000000e+00> : vector<8x32xf32>
    %137 = tpu.matmul %135, %136, %cst_35 {dimension_numbers = #tpu.dot_dimension_numbers<[1], [0], [0], [1], [0, 0, 1, 1], [], []>} : vector<8x32xbf16>, vector<32x32xbf16>, vector<8x32xf32> -> vector<8x32xf32>
    %c0_36 = arith.constant 0 : index
    %c0_37 = arith.constant 0 : index
    %138 = vector.load %arg5[%c0_36, %c0_37] : memref<1x32xf32, #tpu.memory_space<vmem>>, vector<1x32xf32>
    %139 = vector.broadcast %138 : vector<1x32xf32> to vector<8x32xf32>
    %140 = arith.addf %137, %139 : vector<8x32xf32>
    %c0_38 = arith.constant 0 : index
    %c0_39 = arith.constant 0 : index
    %c0_40 = arith.constant 0 : index
    %141 = vector.load %arg7[%c0_38, %c0_39, %c0_40] : memref<1x8x32xf32, #tpu.memory_space<vmem>>, vector<1x8x32xf32>
    %142 = vector.shape_cast %141 : vector<1x8x32xf32> to vector<8x32xf32>
    %143 = vector.shape_cast %140 : vector<8x32xf32> to vector<1x8x32xf32>
    tpu.vector_store %arg7[%c0_38, %c0_39, %c0_40], %143 {strides = array<i32>} : memref<1x8x32xf32, #tpu.memory_space<vmem>>, vector<1x8x32xf32>,
    return
  }
  func.func @transform_0(%arg0: i32) -> (i32, i32, i32) {
    %c0_i32 = arith.constant 0 : i32
    %c0_i32_0 = arith.constant 0 : i32
    %c0_i32_1 = arith.constant 0 : i32
    return %arg0, %c0_i32, %c0_i32_0 : i32, i32, i32
  }
  func.func @transform_1(%arg0: i32) -> (i32, i32) {
    %c0_i32 = arith.constant 0 : i32
    %c0_i32_0 = arith.constant 0 : i32
    %c0_i32_1 = arith.constant 0 : i32
    return %c0_i32, %c0_i32_0 : i32, i32
  }
  func.func @transform_2(%arg0: i32) -> (i32, i32) {
    %c0_i32 = arith.constant 0 : i32
    %c0_i32_0 = arith.constant 0 : i32
    %c0_i32_1 = arith.constant 0 : i32
    return %c0_i32, %c0_i32_0 : i32, i32
  }
  func.func @transform_3(%arg0: i32) -> (i32, i32) {
    %c0_i32 = arith.constant 0 : i32
    %c0_i32_0 = arith.constant 0 : i32
    %c0_i32_1 = arith.constant 0 : i32
    return %c0_i32, %c0_i32_0 : i32, i32
  }
  func.func @transform_4(%arg0: i32) -> (i32, i32) {
    %c0_i32 = arith.constant 0 : i32
    %c0_i32_0 = arith.constant 0 : i32
    %c0_i32_1 = arith.constant 0 : i32
    return %c0_i32, %c0_i32_0 : i32, i32
  }
  func.func @transform_5(%arg0: i32) -> (i32, i32, i32, i32) {
    %c0_i32 = arith.constant 0 : i32
    %c0_i32_0 = arith.constant 0 : i32
    %c0_i32_1 = arith.constant 0 : i32
    %c0_i32_2 = arith.constant 0 : i32
    return %arg0, %c0_i32, %c0_i32_0, %c0_i32_1 : i32, i32, i32, i32
  }
  func.func @transform_6(%arg0: i32) -> (i32, i32, i32) {
    %c0_i32 = arith.constant 0 : i32
    %c0_i32_0 = arith.constant 0 : i32
    %c0_i32_1 = arith.constant 0 : i32
    return %arg0, %c0_i32, %c0_i32_0 : i32, i32, i32
  }
}

</mosaic_0001>

<llo_original>
// kernel: self_multihead_attention.1
$region0: #{self_multihead_attention.1}
  #allocation0 [shape = 'u32[]', space=smem, size = 0x4, offset = 0x4, fixed_abs, tag = 'smem constant byte address 0x4 - core index']
  #allocation1 [shape = 'u32[144,128]{1,0:T(1,128)}', space=vmem, size = 0x12000, scoped, tag = 'internal scratch']
  %s0 = inlined_call_operand.vmem [shape: bf16[2,8,32], index: 0, kind: input, shape index: {}]
  %s1 = inlined_call_operand.vmem [shape: bf16[32,64], index: 1, kind: input, shape index: {}]
  %s2 = inlined_call_operand.vmem [shape: f32[1,32], index: 2, kind: input, shape index: {}]
  %s3 = inlined_call_operand.vmem [shape: bf16[32,32], index: 3, kind: input, shape index: {}]
  %s4 = inlined_call_operand.vmem [shape: f32[1,32], index: 4, kind: input, shape index: {}]
  %s5 = inlined_call_operand.vmem [shape: f32[2,4,8,8], index: 5, kind: input, shape index: {}]
  %s6 = inlined_call_operand.hbm [shape: f32[2,8,32], index: 6, kind: output, shape index: {}]
  %s7 = sld [smem:[#allocation0]]
  $region57: #{self_multihead_attention.1} parent=0
    _
  %s9 = ssub.s32 1, %s7
  %s10 = scalar_select 0, %s9, %s7
  $region1: #{self_multihead_attention.1} parent=0
    #allocation2 [shape = 'u8[8192]{0}', space=vmem, size = 0x2000, scoped, tag = 'output window, operand 0']
    #allocation3 [shape = 's32[2]{0}', space=sflag, size = 0x8, scoped, tag = 'scoped memory for self_multihead_attention.1']
    %11 = vsyncpa [#allocation3], 0
    %s12 = scalar_lea.sflag [#allocation3], 1
    %13 = vsyncpa %s12, 0
    loop: start=0, step=1, limit=4
    $region2: #{self_multihead_attention.1} parent=1 // loop_pre_header
      _
    $region3: #{self_multihead_attention.1} parent=1 // loop_header
      %s15 = sphi 0, %s19
      %p16 = scmp.ge.s32.totalorder %s15, 4
      %s25 = sphi 0, %s27
      %s28 = sphi 0, %s25
      %s29 = sphi 0, %s28
      %s45 = sphi 0, %s29
      %s49 = sphi 0, %s49
      %s51 = sphi 0, %s49
      %s52 = sphi 0, %s51
      %s66 = sphi 0, %s52
      %s70 = sphi 0, %s70
      %s72 = sphi 0, %s70
      %s73 = sphi 0, %s72
      %s87 = sphi 0, %s73
      %s91 = sphi 0, %s91
      %s93 = sphi 0, %s91
      %s94 = sphi 0, %s93
      %s108 = sphi 0, %s94
      %s112 = sphi 0, %s112
      %s114 = sphi 0, %s112
      %s115 = sphi 0, %s114
      %s129 = sphi 0, %s115
      %s135 = sphi 0, %s137
      %s138 = sphi 0, %s135
      %s139 = sphi 0, %s138
      %s155 = sphi 0, %s139
      %s161 = sphi 0, %s163
      %s164 = sphi 0, %s161
      %s165 = sphi 0, %s164
      %s181 = sphi 0, %s165
    $region4: #{self_multihead_attention.1} parent=1 // loop_header_branch
      %18 = sbr.rel (%p16) target = $region8
    $region5: #{self_multihead_attention.1} parent=1 // loop_body
      %s20 = ssub.s32 %s15, 1
      %s21 = ssub.s32 %s15, 2
      %s22 = sadd.s32 %s15, 1
      %s23 = ssub.s32 %s15, %s22
      %p24 = scmp.eq.s32.totalorder %s23, 0
      %s26 = sadd.s32 %s25, 1
      %s27 = scalar_select %p24, %s25, %s26
      %p30 = pneg %p24
      %p31 = scmp.eq.s32.totalorder %s15, 1
      %p32 = por %p30, %p31
      %p33 = scmp.ne.s32.totalorder %s25, %s28
      %p34 = scmp.eq.s32.totalorder %s15, 0
      %p35 = por %p33, %p34
      %p36 = scmp.ne.s32.totalorder %s25, %s28
      %p37 = scmp.eq.s32.totalorder %s20, 1
      %p38 = por %p36, %p37
      %p39 = scmp.ne.s32.totalorder %s28, %s29
      %p40 = scmp.eq.s32.totalorder %s20, 0
      %p41 = por %p39, %p40
      %p42 = scmp.ne.s32.totalorder %s28, %s29
      %p43 = scmp.eq.s32.totalorder %s21, 1
      %p44 = por %p42, %p43
      %p46 = scmp.ne.s32.totalorder %s29, %s45
      %p47 = scmp.eq.s32.totalorder %s21, 0
      %p48 = por %p46, %p47
      %s50 = sadd.s32 %s49, 1
      %p53 = scmp.eq.s32.totalorder %s15, 1
      %p54 = scmp.ne.s32.totalorder %s49, %s51
      %p55 = scmp.eq.s32.totalorder %s15, 0
      %p56 = por %p54, %p55
      %p57 = scmp.ne.s32.totalorder %s49, %s51
      %p58 = scmp.eq.s32.totalorder %s20, 1
      %p59 = por %p57, %p58
      %p60 = scmp.ne.s32.totalorder %s51, %s52
      %p61 = scmp.eq.s32.totalorder %s20, 0
      %p62 = por %p60, %p61
      %p63 = scmp.ne.s32.totalorder %s51, %s52
      %p64 = scmp.eq.s32.totalorder %s21, 1
      %p65 = por %p63, %p64
      %p67 = scmp.ne.s32.totalorder %s52, %s66
      %p68 = scmp.eq.s32.totalorder %s21, 0
      %p69 = por %p67, %p68
      %s71 = sadd.s32 %s70, 1
      %p74 = scmp.eq.s32.totalorder %s15, 1
      %p75 = scmp.ne.s32.totalorder %s70, %s72
      %p76 = scmp.eq.s32.totalorder %s15, 0
      %p77 = por %p75, %p76
      %p78 = scmp.ne.s32.totalorder %s70, %s72
      %p79 = scmp.eq.s32.totalorder %s20, 1
      %p80 = por %p78, %p79
      %p81 = scmp.ne.s32.totalorder %s72, %s73
      %p82 = scmp.eq.s32.totalorder %s20, 0
      %p83 = por %p81, %p82
      %p84 = scmp.ne.s32.totalorder %s72, %s73
      %p85 = scmp.eq.s32.totalorder %s21, 1
      %p86 = por %p84, %p85
      %p88 = scmp.ne.s32.totalorder %s73, %s87
      %p89 = scmp.eq.s32.totalorder %s21, 0
      %p90 = por %p88, %p89
      %s92 = sadd.s32 %s91, 1
      %p95 = scmp.eq.s32.totalorder %s15, 1
      %p96 = scmp.ne.s32.totalorder %s91, %s93
      %p97 = scmp.eq.s32.totalorder %s15, 0
      %p98 = por %p96, %p97
      %p99 = scmp.ne.s32.totalorder %s91, %s93
      %p100 = scmp.eq.s32.totalorder %s20, 1
      %p101 = por %p99, %p100
      %p102 = scmp.ne.s32.totalorder %s93, %s94
      %p103 = scmp.eq.s32.totalorder %s20, 0
      %p104 = por %p102, %p103
      %p105 = scmp.ne.s32.totalorder %s93, %s94
      %p106 = scmp.eq.s32.totalorder %s21, 1
      %p107 = por %p105, %p106
      %p109 = scmp.ne.s32.totalorder %s94, %s108
      %p110 = scmp.eq.s32.totalorder %s21, 0
      %p111 = por %p109, %p110
      %s113 = sadd.s32 %s112, 1
      %p116 = scmp.eq.s32.totalorder %s15, 1
      %p117 = scmp.ne.s32.totalorder %s112, %s114
      %p118 = scmp.eq.s32.totalorder %s15, 0
      %p119 = por %p117, %p118
      %p120 = scmp.ne.s32.totalorder %s112, %s114
      %p121 = scmp.eq.s32.totalorder %s20, 1
      %p122 = por %p120, %p121
      %p123 = scmp.ne.s32.totalorder %s114, %s115
      %p124 = scmp.eq.s32.totalorder %s20, 0
      %p125 = por %p123, %p124
      %p126 = scmp.ne.s32.totalorder %s114, %s115
      %p127 = scmp.eq.s32.totalorder %s21, 1
      %p128 = por %p126, %p127
      %p130 = scmp.ne.s32.totalorder %s115, %s129
      %p131 = scmp.eq.s32.totalorder %s21, 0
      %p132 = por %p130, %p131
      %s133 = ssub.s32 %s15, %s22
      %p134 = scmp.eq.s32.totalorder %s133, 0
      %s136 = sadd.s32 %s135, 1
      %s137 = scalar_select %p134, %s135, %s136
      %p140 = pneg %p134
      %p141 = scmp.eq.s32.totalorder %s15, 1
      %p142 = por %p140, %p141
      %p143 = scmp.ne.s32.totalorder %s135, %s138
      %p144 = scmp.eq.s32.totalorder %s15, 0
      %p145 = por %p143, %p144
      %p146 = scmp.ne.s32.totalorder %s135, %s138
      %p147 = scmp.eq.s32.totalorder %s20, 1
      %p148 = por %p146, %p147
      %p149 = scmp.ne.s32.totalorder %s138, %s139
      %p150 = scmp.eq.s32.totalorder %s20, 0
      %p151 = por %p149, %p150
      %p152 = scmp.ne.s32.totalorder %s138, %s139
      %p153 = scmp.eq.s32.totalorder %s21, 1
      %p154 = por %p152, %p153
      %p156 = scmp.ne.s32.totalorder %s139, %s155
      %p157 = scmp.eq.s32.totalorder %s21, 0
      %p158 = por %p156, %p157
      %s159 = ssub.s32 %s15, %s22
      %p160 = scmp.eq.s32.totalorder %s159, 0
      %s162 = sadd.s32 %s161, 1
      %s163 = scalar_select %p160, %s161, %s162
      %p166 = pneg %p160
      %p167 = scmp.eq.s32.totalorder %s15, 1
      %p168 = por %p166, %p167
      %p169 = scmp.ne.s32.totalorder %s161, %s164
      %p170 = scmp.eq.s32.totalorder %s15, 0
      %p171 = por %p169, %p170
      %p172 = scmp.ne.s32.totalorder %s161, %s164
      %p173 = scmp.eq.s32.totalorder %s20, 1
      %p174 = por %p172, %p173
      %p175 = scmp.ne.s32.totalorder %s164, %s165
      %p176 = scmp.eq.s32.totalorder %s20, 0
      %p177 = por %p175, %p176
      %p178 = scmp.ne.s32.totalorder %s164, %s165
      %p179 = scmp.eq.s32.totalorder %s21, 1
      %p180 = por %p178, %p179
      %p182 = scmp.ne.s32.totalorder %s165, %s181
      %p183 = scmp.eq.s32.totalorder %s21, 0
      %p184 = por %p182, %p183
      %p185 = scmp.le.s32.totalorder 1, %s15
      %p186 = scmp.lt.s32.totalorder %s15, 3
      %p187 = pnand %p185, %p186
      %p188 = pneg %p187
      // Predicated region
      $region9: #{self_multihead_attention.1} parent=5 // pred_check
        _
      $region10: #{self_multihead_attention.1} parent=5 // pred_check_branch
        %190 = sbr.rel (%p187) target = $region12
      $region11: #{self_multihead_attention.1} parent=5 // pred_region
        %s191 = ssub.s32 %s15, 1
        // Predicated region
        $region13: #{self_multihead_attention.1} parent=11 // pred_check
          %p192 = pneg %p62
        $region14: #{self_multihead_attention.1} parent=11 // pred_check_branch
          %194 = sbr.rel (%p192) target = $region16
        $region15: #{self_multihead_attention.1} parent=11 // pred_region
          _
        $region16: #{self_multihead_attention.1} parent=11 // pred_fallthru
          _
        // Predicated region
        $region17: #{self_multihead_attention.1} parent=11 // pred_check
          %p195 = pneg %p83
        $region18: #{self_multihead_attention.1} parent=11 // pred_check_branch
          %197 = sbr.rel (%p195) target = $region20
        $region19: #{self_multihead_attention.1} parent=11 // pred_region
          _
        $region20: #{self_multihead_attention.1} parent=11 // pred_fallthru
          _
        // Predicated region
        $region21: #{self_multihead_attention.1} parent=11 // pred_check
          %p198 = pneg %p104
        $region22: #{self_multihead_attention.1} parent=11 // pred_check_branch
          %200 = sbr.rel (%p198) target = $region24
        $region23: #{self_multihead_attention.1} parent=11 // pred_region
          _
        $region24: #{self_multihead_attention.1} parent=11 // pred_fallthru
          _
        // Predicated region
        $region25: #{self_multihead_attention.1} parent=11 // pred_check
          %p201 = pneg %p125
        $region26: #{self_multihead_attention.1} parent=11 // pred_check_branch
          %203 = sbr.rel (%p201) target = $region28
        $region27: #{self_multihead_attention.1} parent=11 // pred_region
          _
        $region28: #{self_multihead_attention.1} parent=11 // pred_fallthru
          _
      $region12: #{self_multihead_attention.1} parent=5 // pred_fallthru
        _
      %p204 = scmp.lt.s32.totalorder %s15, 2
      // Predicated region
      $region29: #{self_multihead_attention.1} parent=5 // pred_check
        %p205 = pneg %p204
      $region30: #{self_multihead_attention.1} parent=5 // pred_check_branch
        %207 = sbr.rel (%p205) target = $region32
      $region31: #{self_multihead_attention.1} parent=5 // pred_region
        // Predicated region
        $region33: #{self_multihead_attention.1} parent=31 // pred_check
          %p208 = pneg %p35
        $region34: #{self_multihead_attention.1} parent=31 // pred_check_branch
          %210 = sbr.rel (%p208) target = $region36
        $region35: #{self_multihead_attention.1} parent=31 // pred_region
          %p211 = scmp.lt.s32.totalorder %s15, 1
          %s212 = scalar_select %p211, %s15, 1
          %s213 = smul.addr %s212, 4
          %s214 = scalar_lea.vmem %s0, %s213
        $region36: #{self_multihead_attention.1} parent=31 // pred_fallthru
          _
        // Predicated region
        $region37: #{self_multihead_attention.1} parent=31 // pred_check
          %p215 = pneg %p145
        $region38: #{self_multihead_attention.1} parent=31 // pred_check_branch
          %217 = sbr.rel (%p215) target = $region40
        $region39: #{self_multihead_attention.1} parent=31 // pred_region
          %p218 = scmp.lt.s32.totalorder %s15, 1
          %s219 = scalar_select %p218, %s15, 1
          %s220 = smul.addr %s219, 4
          %s221 = smul.addr %s220, 8
          %s222 = scalar_lea.vmem %s5, %s221
        $region40: #{self_multihead_attention.1} parent=31 // pred_fallthru
          _
      $region32: #{self_multihead_attention.1} parent=5 // pred_fallthru
        _
      %p223 = scmp.le.s32.totalorder 1, %s15
      %p224 = scmp.lt.s32.totalorder %s15, 3
      %p225 = pnand %p223, %p224
      %p226 = pneg %p225
      // Predicated region
      $region41: #{self_multihead_attention.1} parent=5 // pred_check
        _
      $region42: #{self_multihead_attention.1} parent=5 // pred_check_branch
        %228 = sbr.rel (%p225) target = $region44
      $region43: #{self_multihead_attention.1} parent=5 // pred_region
        %s229 = ssub.s32 %s15, 1
        %p230 = scmp.lt.s32.totalorder %s20, 1
        %s231 = scalar_select %p230, %s20, 1
        %s232 = smul.addr %s231, 4
        %s233 = scalar_lea.vmem %s0, %s232
        %p234 = pneg %p41
        %p235 = pneg %p38
        %p236 = pneg %p62
        %p237 = pneg %p59
        %p238 = pneg %p83
        %p239 = pneg %p80
        %p240 = pneg %p104
        %p241 = pneg %p101
        %p242 = pneg %p125
        %p243 = pneg %p122
        %p244 = scmp.lt.s32.totalorder %s20, 1
        %s245 = scalar_select %p244, %s20, 1
        %s246 = smul.addr %s245, 4
        %s247 = smul.addr %s246, 8
        %s248 = scalar_lea.vmem %s5, %s247
        %p249 = pneg %p151
        %p250 = pneg %p148
        %p251 = pneg %p177
        %p252 = pneg %p174
        %s253 = sand.u32 %s164, 1
        %s254 = scalar_lea.sflag [#allocation3], %s253
        %s255 = sand.u32 %s164, 1
        %s256 = smul.addr %s255, 8
        %s257 = scalar_lea.vmem [#allocation2], %s256
        %p258 = scmp.lt.s32.totalorder %s20, 1
        %s259 = scalar_select %p258, %s20, 1
        %s260 = smul.addr %s259, 4
        %s261 = scalar_lea.vmem %s0, %s260
        %p262 = scmp.lt.s32.totalorder %s20, 1
        %s263 = scalar_select %p262, %s20, 1
        %s264 = smul.addr %s263, 4
        %s265 = smul.addr %s264, 8
        %s266 = scalar_lea.vmem %s5, %s265
        %v268 = vld [vmem:[%s261] sm:$0xf]
        %v269 = vld [vmem:[%s1] sm:$0xf]
        %v270 = vld [vmem:[%s1 + $0x4] sm:$0xf]
        %v271 = vld [vmem:[%s1 + $0x8] sm:$0xf]
        %v272 = vld [vmem:[%s1 + $0xc] sm:$0xf]
        %v277 = vunpack.c.l.b16 %v269
        %v278 = vunpack.c.l.b16 %v270
        %v279 = vunpack.c.l.b16 %v271
        %v280 = vunpack.c.l.b16 %v272
        %v281 = vpack.c.b16 %v278, %v277
        %v282 = vpack.c.b16 %v280, %v279
        %vm285 = vcmask 261120
        %v287 = vsel %vm285, %v268, 0
        %289 = vmatprep.subr.bf16.mxu0 0
        %290 = vmatpush1.bf16.msra.mxu0 0
        %291 = vmatprep.subr.bf16.mxu0 0
        %292 = vmatpush1.bf16.msra.mxu0 0
        %293 = vmatprep.subr.bf16.mxu0 0
        %294 = vmatpush1.bf16.msra.mxu0 0
        %295 = vmatprep.subr.bf16.mxu0 0
        %296 = vmatpush1.bf16.msra.mxu0 0
        %297 = vmatprep.subr.bf16.mxu0 0
        %298 = vmatpush1.bf16.msra.mxu0 0
        %299 = vmatprep.subr.bf16.mxu0 0
        %300 = vmatpush1.bf16.msra.mxu0 0
        %301 = vmatprep.subr.bf16.mxu0 0
        %302 = vmatpush1.bf16.msra.mxu0 %v282
        %303 = vmatprep.subr.bf16.mxu0 0
        %304 = vmatpush1.bf16.msra.mxu0 %v281
        %305 = vmatprep.subr.bf16.mxu0 0
        %306 = vmatpush2.bf16.msra.mxu0 0
        %307 = vmatprep.subr.bf16.mxu0 0
        %308 = vmatpush2.bf16.msra.mxu0 0
        %309 = vmatprep.subr.bf16.mxu0 0
        %310 = vmatpush2.bf16.msra.mxu0 0
        %311 = vmatprep.subr.bf16.mxu0 0
        %312 = vmatpush2.bf16.msra.mxu0 0
        %313 = vmatprep.subr.bf16.mxu0 0
        %314 = vmatpush2.bf16.msra.mxu0 0
        %315 = vmatprep.subr.bf16.mxu0 0
        %316 = vmatpush2.bf16.msra.mxu0 0
        %317 = vmatprep.subr.bf16.mxu0 0
        %318 = vmatpush2.bf16.msra.mxu0 0
        %319 = vmatprep.subr.bf16.mxu0 0
        %320 = vmatpush2.bf16.msra.mxu0 0
        %321 = vmatprep.mubr.bf16.mxu0 0
        %322 = vmatmul.mubr.bf16.gmra.mxu0 %v287
        %v323 = vpop.f32.mrf.mxu0
        %v324 = vadd.f32 0.0, %v323
        %v325 = vpop.f32.mrf.mxu0
        %v326 = vpop.f32.mrf.mxu0
        %v327 = vpop.f32.mrf.mxu0
        %328 = vdwg.mxu0
        %v329 = vld [vmem:[%s2] sm:$0x1]
        %v331 = vlaneseq
        %v332 = vshrl.u32 %v331, 7
        %v333 = vsub.s32 0, %v332
        %v334 = vrot.slane %v329, %v333
        %v336 = vadd.f32 %v324, %v334
        %338 = vrot.lane.b32.xlu0 %v336, 120
        %v339 = vpop.permute.xlu0 %338
        %341 = vrot.lane.b32.xlu0 %v336, 112
        %v342 = vpop.permute.xlu0 %341
        %344 = vrot.lane.b32.xlu0 %v336, 104
        %v345 = vpop.permute.xlu0 %344
        %v347 = vpack.c.bf16 %v336, %v336
        %v348 = vpack.c.bf16 %v339, %v339
        %v349 = vpack.c.bf16 %v342, %v342
        %v350 = vpack.c.bf16 %v345, %v345
        %352 = vrot.lane.b32.xlu0 %v324, 120
        %v353 = vpop.permute.xlu0 %352
        %355 = vrot.lane.b32.xlu0 %v324, 112
        %v356 = vpop.permute.xlu0 %355
        %358 = vrot.lane.b32.xlu0 %v324, 104
        %v359 = vpop.permute.xlu0 %358
        %v361 = vpack.c.bf16 %v324, %v324
        %v362 = vpack.c.bf16 %v353, %v353
        %v363 = vpack.c.bf16 %v356, %v356
        %v364 = vpack.c.bf16 %v359, %v359
        %vm365 = vcmask 64512
        %v367 = vsel %vm365, %v347, 0
        %369 = vmatprep.subr.bf16.mxu0 0
        %370 = vmatpush1.bf16.xpose.msra.mxu0 0
        %371 = vmatprep.subr.bf16.mxu0 0
        %372 = vmatpush1.bf16.xpose.msra.mxu0 0
        %373 = vmatprep.subr.bf16.mxu0 0
        %374 = vmatpush1.bf16.xpose.msra.mxu0 0
        %375 = vmatprep.subr.bf16.mxu0 0
        %376 = vmatpush1.bf16.xpose.msra.mxu0 0
        %377 = vmatprep.subr.bf16.mxu0 0
        %378 = vmatpush1.bf16.xpose.msra.mxu0 0
        %379 = vmatprep.subr.bf16.mxu0 0
        %380 = vmatpush1.bf16.xpose.msra.mxu0 0
        %381 = vmatprep.subr.bf16.mxu0 0
        %382 = vmatpush1.bf16.xpose.msra.mxu0 0
        %383 = vmatprep.subr.bf16.mxu0 0
        %384 = vmatpush1.bf16.xpose.msra.mxu0 %v367
        %385 = vmatprep.subr.bf16.mxu0 0
        %386 = vmatpush2.bf16.xpose.msra.mxu0 0
        %387 = vmatprep.subr.bf16.mxu0 0
        %388 = vmatpush2.bf16.xpose.msra.mxu0 0
        %389 = vmatprep.subr.bf16.mxu0 0
        %390 = vmatpush2.bf16.xpose.msra.mxu0 0
        %391 = vmatprep.subr.bf16.mxu0 0
        %392 = vmatpush2.bf16.xpose.msra.mxu0 0
        %393 = vmatprep.subr.bf16.mxu0 0
        %394 = vmatpush2.bf16.xpose.msra.mxu0 0
        %395 = vmatprep.subr.bf16.mxu0 0
        %396 = vmatpush2.bf16.xpose.msra.mxu0 0
        %397 = vmatprep.subr.bf16.mxu0 0
        %398 = vmatpush2.bf16.xpose.msra.mxu0 0
        %399 = vmatprep.subr.bf16.mxu0 0
        %400 = vmatpush2.bf16.xpose.msra.mxu0 0
        %401 = vmatprep.mubr.bf16.mxu0 0
        %402 = vmatmul.mubr.bf16.gmra.mxu0 %v367
        %v403 = vpop.f32.mrf.mxu0
        %v404 = vadd.f32 0.0, %v403
        %v405 = vpop.f32.mrf.mxu0
        %v406 = vpop.f32.mrf.mxu0
        %v407 = vpop.f32.mrf.mxu0
        %408 = vdwg.mxu0
        %v410 = vsel %vm365, %v348, 0
        %412 = vmatprep.subr.bf16.mxu0 0
        %413 = vmatpush1.bf16.xpose.msra.mxu0 0
        %414 = vmatprep.subr.bf16.mxu0 0
        %415 = vmatpush1.bf16.xpose.msra.mxu0 0
        %416 = vmatprep.subr.bf16.mxu0 0
        %417 = vmatpush1.bf16.xpose.msra.mxu0 0
        %418 = vmatprep.subr.bf16.mxu0 0
        %419 = vmatpush1.bf16.xpose.msra.mxu0 0
        %420 = vmatprep.subr.bf16.mxu0 0
        %421 = vmatpush1.bf16.xpose.msra.mxu0 0
        %422 = vmatprep.subr.bf16.mxu0 0
        %423 = vmatpush1.bf16.xpose.msra.mxu0 0
        %424 = vmatprep.subr.bf16.mxu0 0
        %425 = vmatpush1.bf16.xpose.msra.mxu0 0
        %426 = vmatprep.subr.bf16.mxu0 0
        %427 = vmatpush1.bf16.xpose.msra.mxu0 %v410
        %428 = vmatprep.subr.bf16.mxu0 0
        %429 = vmatpush2.bf16.xpose.msra.mxu0 0
        %430 = vmatprep.subr.bf16.mxu0 0
        %431 = vmatpush2.bf16.xpose.msra.mxu0 0
        %432 = vmatprep.subr.bf16.mxu0 0
        %433 = vmatpush2.bf16.xpose.msra.mxu0 0
        %434 = vmatprep.subr.bf16.mxu0 0
        %435 = vmatpush2.bf16.xpose.msra.mxu0 0
        %436 = vmatprep.subr.bf16.mxu0 0
        %437 = vmatpush2.bf16.xpose.msra.mxu0 0
        %438 = vmatprep.subr.bf16.mxu0 0
        %439 = vmatpush2.bf16.xpose.msra.mxu0 0
        %440 = vmatprep.subr.bf16.mxu0 0
        %441 = vmatpush2.bf16.xpose.msra.mxu0 0
        %442 = vmatprep.subr.bf16.mxu0 0
        %443 = vmatpush2.bf16.xpose.msra.mxu0 0
        %444 = vmatprep.mubr.bf16.mxu0 0
        %445 = vmatmul.mubr.bf16.gmra.mxu0 %v410
        %v446 = vpop.f32.mrf.mxu0
        %v447 = vadd.f32 0.0, %v446
        %v448 = vpop.f32.mrf.mxu0
        %v449 = vpop.f32.mrf.mxu0
        %v450 = vpop.f32.mrf.mxu0
        %451 = vdwg.mxu0
        %v453 = vsel %vm365, %v349, 0
        %455 = vmatprep.subr.bf16.mxu0 0
        %456 = vmatpush1.bf16.xpose.msra.mxu0 0
        %457 = vmatprep.subr.bf16.mxu0 0
        %458 = vmatpush1.bf16.xpose.msra.mxu0 0
        %459 = vmatprep.subr.bf16.mxu0 0
        %460 = vmatpush1.bf16.xpose.msra.mxu0 0
        %461 = vmatprep.subr.bf16.mxu0 0
        %462 = vmatpush1.bf16.xpose.msra.mxu0 0
        %463 = vmatprep.subr.bf16.mxu0 0
        %464 = vmatpush1.bf16.xpose.msra.mxu0 0
        %465 = vmatprep.subr.bf16.mxu0 0
        %466 = vmatpush1.bf16.xpose.msra.mxu0 0
        %467 = vmatprep.subr.bf16.mxu0 0
        %468 = vmatpush1.bf16.xpose.msra.mxu0 0
        %469 = vmatprep.subr.bf16.mxu0 0
        %470 = vmatpush1.bf16.xpose.msra.mxu0 %v453
        %471 = vmatprep.subr.bf16.mxu0 0
        %472 = vmatpush2.bf16.xpose.msra.mxu0 0
        %473 = vmatprep.subr.bf16.mxu0 0
        %474 = vmatpush2.bf16.xpose.msra.mxu0 0
        %475 = vmatprep.subr.bf16.mxu0 0
        %476 = vmatpush2.bf16.xpose.msra.mxu0 0
        %477 = vmatprep.subr.bf16.mxu0 0
        %478 = vmatpush2.bf16.xpose.msra.mxu0 0
        %479 = vmatprep.subr.bf16.mxu0 0
        %480 = vmatpush2.bf16.xpose.msra.mxu0 0
        %481 = vmatprep.subr.bf16.mxu0 0
        %482 = vmatpush2.bf16.xpose.msra.mxu0 0
        %483 = vmatprep.subr.bf16.mxu0 0
        %484 = vmatpush2.bf16.xpose.msra.mxu0 0
        %485 = vmatprep.subr.bf16.mxu0 0
        %486 = vmatpush2.bf16.xpose.msra.mxu0 0
        %487 = vmatprep.mubr.bf16.mxu0 0
        %488 = vmatmul.mubr.bf16.gmra.mxu0 %v453
        %v489 = vpop.f32.mrf.mxu0
        %v490 = vadd.f32 0.0, %v489
        %v491 = vpop.f32.mrf.mxu0
        %v492 = vpop.f32.mrf.mxu0
        %v493 = vpop.f32.mrf.mxu0
        %494 = vdwg.mxu0
        %v496 = vsel %vm365, %v350, 0
        %498 = vmatprep.subr.bf16.mxu0 0
        %499 = vmatpush1.bf16.xpose.msra.mxu0 0
        %500 = vmatprep.subr.bf16.mxu0 0
        %501 = vmatpush1.bf16.xpose.msra.mxu0 0
        %502 = vmatprep.subr.bf16.mxu0 0
        %503 = vmatpush1.bf16.xpose.msra.mxu0 0
        %504 = vmatprep.subr.bf16.mxu0 0
        %505 = vmatpush1.bf16.xpose.msra.mxu0 0
        %506 = vmatprep.subr.bf16.mxu0 0
        %507 = vmatpush1.bf16.xpose.msra.mxu0 0
        %508 = vmatprep.subr.bf16.mxu0 0
        %509 = vmatpush1.bf16.xpose.msra.mxu0 0
        %510 = vmatprep.subr.bf16.mxu0 0
        %511 = vmatpush1.bf16.xpose.msra.mxu0 0
        %512 = vmatprep.subr.bf16.mxu0 0
        %513 = vmatpush1.bf16.xpose.msra.mxu0 %v496
        %514 = vmatprep.subr.bf16.mxu0 0
        %515 = vmatpush2.bf16.xpose.msra.mxu0 0
        %516 = vmatprep.subr.bf16.mxu0 0
        %517 = vmatpush2.bf16.xpose.msra.mxu0 0
        %518 = vmatprep.subr.bf16.mxu0 0
        %519 = vmatpush2.bf16.xpose.msra.mxu0 0
        %520 = vmatprep.subr.bf16.mxu0 0
        %521 = vmatpush2.bf16.xpose.msra.mxu0 0
        %522 = vmatprep.subr.bf16.mxu0 0
        %523 = vmatpush2.bf16.xpose.msra.mxu0 0
        %524 = vmatprep.subr.bf16.mxu0 0
        %525 = vmatpush2.bf16.xpose.msra.mxu0 0
        %526 = vmatprep.subr.bf16.mxu0 0
        %527 = vmatpush2.bf16.xpose.msra.mxu0 0
        %528 = vmatprep.subr.bf16.mxu0 0
        %529 = vmatpush2.bf16.xpose.msra.mxu0 0
        %530 = vmatprep.mubr.bf16.mxu0 0
        %531 = vmatmul.mubr.bf16.gmra.mxu0 %v496
        %v532 = vpop.f32.mrf.mxu0
        %v533 = vadd.f32 0.0, %v532
        %v534 = vpop.f32.mrf.mxu0
        %v535 = vpop.f32.mrf.mxu0
        %v536 = vpop.f32.mrf.mxu0
        %537 = vdwg.mxu0
        %v538 = vmul.f32 %v404, 0.125
        %v539 = vmul.f32 %v447, 0.125
        %v540 = vmul.f32 %v490, 0.125
        %v541 = vmul.f32 %v533, 0.125
        %v542 = vld [vmem:[%s266] sm:$0xff]
        %v543 = vld [vmem:[%s266 + $0x8] sm:$0xff]
        %v544 = vld [vmem:[%s266 + $0x10] sm:$0xff]
        %v545 = vld [vmem:[%s266 + $0x18] sm:$0xff]
        %v546 = vadd.f32 %v538, %v542
        %v547 = vadd.f32 %v539, %v543
        %v548 = vadd.f32 %v540, %v544
        %v549 = vadd.f32 %v541, %v545
        %550 = vxpose.xlu0.b32.start [1/16] %v546, 128
        %551 = vxpose.xlu0.b32.cont [2/16] 0.0, 128
        %552 = vxpose.xlu0.b32.cont [3/16] 0.0, 128
        %553 = vxpose.xlu0.b32.cont [4/16] 0.0, 128
        %554 = vxpose.xlu0.b32.cont [5/16] 0.0, 128
        %555 = vxpose.xlu0.b32.cont [6/16] 0.0, 128
        %556 = vxpose.xlu0.b32.cont [7/16] 0.0, 128
        %557 = vxpose.xlu0.b32.cont [8/16] 0.0, 128
        %558 = vxpose.xlu0.b32.cont [9/16] 0.0, 128
        %559 = vxpose.xlu0.b32.cont [10/16] 0.0, 128
        %560 = vxpose.xlu0.b32.cont [11/16] 0.0, 128
        %561 = vxpose.xlu0.b32.cont [12/16] 0.0, 128
        %562 = vxpose.xlu0.b32.cont [13/16] 0.0, 128
        %563 = vxpose.xlu0.b32.cont [14/16] 0.0, 128
        %564 = vxpose.xlu0.b32.cont [15/16] 0.0, 128
        %565 = vxpose.xlu0.b32.end [16/16] 0.0, 128
        %v566 = vpop.trf.xlu0
        %v567 = vpop.trf.xlu0
        %v568 = vpop.trf.xlu0
        %v569 = vpop.trf.xlu0
        %v570 = vpop.trf.xlu0
        %v571 = vpop.trf.xlu0
        %v572 = vpop.trf.xlu0
        %v573 = vpop.trf.xlu0
        %v574 = vpop.trf.xlu0
        %v575 = vpop.trf.xlu0
        %v576 = vpop.trf.xlu0
        %v577 = vpop.trf.xlu0
        %v578 = vpop.trf.xlu0
        %v579 = vpop.trf.xlu0
        %v580 = vpop.trf.xlu0
        %v581 = vpop.trf.xlu0
        %582 = vxpose.xlu0.b32.start [1/16] %v547, 128
        %583 = vxpose.xlu0.b32.cont [2/16] 0.0, 128
        %584 = vxpose.xlu0.b32.cont [3/16] 0.0, 128
        %585 = vxpose.xlu0.b32.cont [4/16] 0.0, 128
        %586 = vxpose.xlu0.b32.cont [5/16] 0.0, 128
        %587 = vxpose.xlu0.b32.cont [6/16] 0.0, 128
        %588 = vxpose.xlu0.b32.cont [7/16] 0.0, 128
        %589 = vxpose.xlu0.b32.cont [8/16] 0.0, 128
        %590 = vxpose.xlu0.b32.cont [9/16] 0.0, 128
        %591 = vxpose.xlu0.b32.cont [10/16] 0.0, 128
        %592 = vxpose.xlu0.b32.cont [11/16] 0.0, 128
        %593 = vxpose.xlu0.b32.cont [12/16] 0.0, 128
        %594 = vxpose.xlu0.b32.cont [13/16] 0.0, 128
        %595 = vxpose.xlu0.b32.cont [14/16] 0.0, 128
        %596 = vxpose.xlu0.b32.cont [15/16] 0.0, 128
        %597 = vxpose.xlu0.b32.end [16/16] 0.0, 128
        %v598 = vpop.trf.xlu0
        %v599 = vpop.trf.xlu0
        %v600 = vpop.trf.xlu0
        %v601 = vpop.trf.xlu0
        %v602 = vpop.trf.xlu0
        %v603 = vpop.trf.xlu0
        %v604 = vpop.trf.xlu0
        %v605 = vpop.trf.xlu0
        %v606 = vpop.trf.xlu0
        %v607 = vpop.trf.xlu0
        %v608 = vpop.trf.xlu0
        %v609 = vpop.trf.xlu0
        %v610 = vpop.trf.xlu0
        %v611 = vpop.trf.xlu0
        %v612 = vpop.trf.xlu0
        %v613 = vpop.trf.xlu0
        %614 = vxpose.xlu0.b32.start [1/16] %v548, 128
        %615 = vxpose.xlu0.b32.cont [2/16] 0.0, 128
        %616 = vxpose.xlu0.b32.cont [3/16] 0.0, 128
        %617 = vxpose.xlu0.b32.cont [4/16] 0.0, 128
        %618 = vxpose.xlu0.b32.cont [5/16] 0.0, 128
        %619 = vxpose.xlu0.b32.cont [6/16] 0.0, 128
        %620 = vxpose.xlu0.b32.cont [7/16] 0.0, 128
        %621 = vxpose.xlu0.b32.cont [8/16] 0.0, 128
        %622 = vxpose.xlu0.b32.cont [9/16] 0.0, 128
        %623 = vxpose.xlu0.b32.cont [10/16] 0.0, 128
        %624 = vxpose.xlu0.b32.cont [11/16] 0.0, 128
        %625 = vxpose.xlu0.b32.cont [12/16] 0.0, 128
        %626 = vxpose.xlu0.b32.cont [13/16] 0.0, 128
        %627 = vxpose.xlu0.b32.cont [14/16] 0.0, 128
        %628 = vxpose.xlu0.b32.cont [15/16] 0.0, 128
        %629 = vxpose.xlu0.b32.end [16/16] 0.0, 128
        %v630 = vpop.trf.xlu0
        %v631 = vpop.trf.xlu0
        %v632 = vpop.trf.xlu0
        %v633 = vpop.trf.xlu0
        %v634 = vpop.trf.xlu0
        %v635 = vpop.trf.xlu0
        %v636 = vpop.trf.xlu0
        %v637 = vpop.trf.xlu0
        %v638 = vpop.trf.xlu0
        %v639 = vpop.trf.xlu0
        %v640 = vpop.trf.xlu0
        %v641 = vpop.trf.xlu0
        %v642 = vpop.trf.xlu0
        %v643 = vpop.trf.xlu0
        %v644 = vpop.trf.xlu0
        %v645 = vpop.trf.xlu0
        %646 = vxpose.xlu0.b32.start [1/16] %v549, 128
        %647 = vxpose.xlu0.b32.cont [2/16] 0.0, 128
        %648 = vxpose.xlu0.b32.cont [3/16] 0.0, 128
        %649 = vxpose.xlu0.b32.cont [4/16] 0.0, 128
        %650 = vxpose.xlu0.b32.cont [5/16] 0.0, 128
        %651 = vxpose.xlu0.b32.cont [6/16] 0.0, 128
        %652 = vxpose.xlu0.b32.cont [7/16] 0.0, 128
        %653 = vxpose.xlu0.b32.cont [8/16] 0.0, 128
        %654 = vxpose.xlu0.b32.cont [9/16] 0.0, 128
        %655 = vxpose.xlu0.b32.cont [10/16] 0.0, 128
        %656 = vxpose.xlu0.b32.cont [11/16] 0.0, 128
        %657 = vxpose.xlu0.b32.cont [12/16] 0.0, 128
        %658 = vxpose.xlu0.b32.cont [13/16] 0.0, 128
        %659 = vxpose.xlu0.b32.cont [14/16] 0.0, 128
        %660 = vxpose.xlu0.b32.cont [15/16] 0.0, 128
        %661 = vxpose.xlu0.b32.end [16/16] 0.0, 128
        %v662 = vpop.trf.xlu0
        %v663 = vpop.trf.xlu0
        %v664 = vpop.trf.xlu0
        %v665 = vpop.trf.xlu0
        %v666 = vpop.trf.xlu0
        %v667 = vpop.trf.xlu0
        %v668 = vpop.trf.xlu0
        %v669 = vpop.trf.xlu0
        %v670 = vpop.trf.xlu0
        %v671 = vpop.trf.xlu0
        %v672 = vpop.trf.xlu0
        %v673 = vpop.trf.xlu0
        %v674 = vpop.trf.xlu0
        %v675 = vpop.trf.xlu0
        %v676 = vpop.trf.xlu0
        %v677 = vpop.trf.xlu0
        %v678 = vadd.f32 %v546, 0.0
        %v679 = vadd.f32 %v547, 0.0
        %v680 = vadd.f32 %v548, 0.0
        %v681 = vadd.f32 %v549, 0.0
        %v682 = vsel %vm365, %v678, -inf
        %683 = vmax.xlane.f32.xlu0 %v682
        %v684 = vpop.xlane.xlu0 %683
        %v685 = vsel %vm365, %v679, -inf
        %686 = vmax.xlane.f32.xlu0 %v685
        %v687 = vpop.xlane.xlu0 %686
        %v688 = vsel %vm365, %v680, -inf
        %689 = vmax.xlane.f32.xlu0 %v688
        %v690 = vpop.xlane.xlu0 %689
        %v691 = vsel %vm365, %v681, -inf
        %692 = vmax.xlane.f32.xlu0 %v691
        %v693 = vpop.xlane.xlu0 %692
        %v694 = vsub.f32 %v678, %v684
        %v695 = vsub.f32 %v679, %v687
        %v696 = vsub.f32 %v680, %v690
        %v697 = vsub.f32 %v681, %v693
        %v698 = vmul.f32 %v694, 1.442695
        %v699 = vpow.pop %v698
        %v700 = vmul.f32 %v695, 1.442695
        %v701 = vpow.pop %v700
        %v702 = vmul.f32 %v696, 1.442695
        %v703 = vpow.pop %v702
        %v704 = vmul.f32 %v697, 1.442695
        %v705 = vpow.pop %v704
        %v706 = vsel %vm365, %v699, 0.0
        %707 = vadd.xlane.f32.xlu0 %v706
        %v708 = vpop.xlane.xlu0 %707
        %v709 = vsel %vm365, %v701, 0.0
        %710 = vadd.xlane.f32.xlu0 %v709
        %v711 = vpop.xlane.xlu0 %710
        %v712 = vsel %vm365, %v703, 0.0
        %713 = vadd.xlane.f32.xlu0 %v712
        %v714 = vpop.xlane.xlu0 %713
        %v715 = vsel %vm365, %v705, 0.0
        %716 = vadd.xlane.f32.xlu0 %v715
        %v717 = vpop.xlane.xlu0 %716
        %v718 = vlog2.pop %v708
        %v719 = vmul.f32 %v718, 0.6931472
        %v720 = vlog2.pop %v711
        %v721 = vmul.f32 %v720, 0.6931472
        %v722 = vlog2.pop %v714
        %v723 = vmul.f32 %v722, 0.6931472
        %v724 = vlog2.pop %v717
        %v725 = vmul.f32 %v724, 0.6931472
        %v726 = vadd.f32 %v684, %v719
        %v727 = vadd.f32 %v687, %v721
        %v728 = vadd.f32 %v690, %v723
        %v729 = vadd.f32 %v693, %v725
        %v730 = vsub.f32 -2.0794415, %v726
        %v731 = vsub.f32 -2.0794415, %v727
        %v732 = vsub.f32 -2.0794415, %v728
        %v733 = vsub.f32 -2.0794415, %v729
        %v738 = vlaneseq
        %v739 = vand.u32 %v738, 127
        %v740 = vlaneseq
        %v741 = vshrl.u32 %v740, 7
        %v742 = vsub.s32 %v739, %v741
        %v743 = vrot.slane %v730, %v742
        %v744 = vlaneseq
        %v745 = vshrl.u32 %v744, 7
        %v746 = vsub.s32 %v739, %v745
        %v747 = vrot.slane %v731, %v746
        %v748 = vlaneseq
        %v749 = vshrl.u32 %v748, 7
        %v750 = vsub.s32 %v739, %v749
        %v751 = vrot.slane %v732, %v750
        %v752 = vlaneseq
        %v753 = vshrl.u32 %v752, 7
        %v754 = vsub.s32 %v739, %v753
        %v755 = vrot.slane %v733, %v754
        %vm756 = vcmask 1042434
        %v757 = vsel %vm756, %v743, %v743
        %vm758 = vcmask 1043459
        %v759 = vsel %vm758, %v743, %v757
        %vm760 = vcmask 1044484
        %v761 = vsel %vm760, %v743, %v759
        %vm762 = vcmask 1045509
        %v763 = vsel %vm762, %v743, %v761
        %vm764 = vcmask 1046534
        %v765 = vsel %vm764, %v743, %v763
        %vm766 = vcmask 1047559
        %v767 = vsel %vm766, %v743, %v765
        %v768 = vsel %vm756, %v747, %v747
        %v769 = vsel %vm758, %v747, %v768
        %v770 = vsel %vm760, %v747, %v769
        %v771 = vsel %vm762, %v747, %v770
        %v772 = vsel %vm764, %v747, %v771
        %v773 = vsel %vm766, %v747, %v772
        %v774 = vsel %vm756, %v751, %v751
        %v775 = vsel %vm758, %v751, %v774
        %v776 = vsel %vm760, %v751, %v775
        %v777 = vsel %vm762, %v751, %v776
        %v778 = vsel %vm764, %v751, %v777
        %v779 = vsel %vm766, %v751, %v778
        %v780 = vsel %vm756, %v755, %v755
        %v781 = vsel %vm758, %v755, %v780
        %v782 = vsel %vm760, %v755, %v781
        %v783 = vsel %vm762, %v755, %v782
        %v784 = vsel %vm764, %v755, %v783
        %v785 = vsel %vm766, %v755, %v784
        %v790 = vadd.f32 %v566, %v767
        %v791 = vadd.f32 %v598, %v773
        %v792 = vadd.f32 %v630, %v779
        %v793 = vadd.f32 %v662, %v785
        %v794 = vsel %vm365, %v790, -inf
        %795 = vmax.xlane.f32.xlu0 %v794
        %v796 = vpop.xlane.xlu0 %795
        %v797 = vsel %vm365, %v791, -inf
        %798 = vmax.xlane.f32.xlu0 %v797
        %v799 = vpop.xlane.xlu0 %798
        %v800 = vsel %vm365, %v792, -inf
        %801 = vmax.xlane.f32.xlu0 %v800
        %v802 = vpop.xlane.xlu0 %801
        %v803 = vsel %vm365, %v793, -inf
        %804 = vmax.xlane.f32.xlu0 %v803
        %v805 = vpop.xlane.xlu0 %804
        %v806 = vsub.f32 %v790, %v796
        %v807 = vsub.f32 %v791, %v799
        %v808 = vsub.f32 %v792, %v802
        %v809 = vsub.f32 %v793, %v805
        %v810 = vmul.f32 %v806, 1.442695
        %v811 = vpow.pop %v810
        %v812 = vmul.f32 %v807, 1.442695
        %v813 = vpow.pop %v812
        %v814 = vmul.f32 %v808, 1.442695
        %v815 = vpow.pop %v814
        %v816 = vmul.f32 %v809, 1.442695
        %v817 = vpow.pop %v816
        %v818 = vsel %vm365, %v811, 0.0
        %819 = vadd.xlane.f32.xlu0 %v818
        %v820 = vpop.xlane.xlu0 %819
        %v821 = vsel %vm365, %v813, 0.0
        %822 = vadd.xlane.f32.xlu0 %v821
        %v823 = vpop.xlane.xlu0 %822
        %v824 = vsel %vm365, %v815, 0.0
        %825 = vadd.xlane.f32.xlu0 %v824
        %v826 = vpop.xlane.xlu0 %825
        %v827 = vsel %vm365, %v817, 0.0
        %828 = vadd.xlane.f32.xlu0 %v827
        %v829 = vpop.xlane.xlu0 %828
        %v830 = vlog2.pop %v820
        %v831 = vmul.f32 %v830, 0.6931472
        %v832 = vlog2.pop %v823
        %v833 = vmul.f32 %v832, 0.6931472
        %v834 = vlog2.pop %v826
        %v835 = vmul.f32 %v834, 0.6931472
        %v836 = vlog2.pop %v829
        %v837 = vmul.f32 %v836, 0.6931472
        %v838 = vadd.f32 %v796, %v831
        %v839 = vadd.f32 %v799, %v833
        %v840 = vadd.f32 %v802, %v835
        %v841 = vadd.f32 %v805, %v837
        %v842 = vsub.f32 -2.0794415, %v838
        %v843 = vsub.f32 -2.0794415, %v839
        %v844 = vsub.f32 -2.0794415, %v840
        %v845 = vsub.f32 -2.0794415, %v841
        %v850 = vlaneseq
        %v851 = vshrl.u32 %v850, 7
        %v852 = vsub.s32 %v739, %v851
        %v853 = vrot.slane %v842, %v852
        %v854 = vlaneseq
        %v855 = vshrl.u32 %v854, 7
        %v856 = vsub.s32 %v739, %v855
        %v857 = vrot.slane %v843, %v856
        %v858 = vlaneseq
        %v859 = vshrl.u32 %v858, 7
        %v860 = vsub.s32 %v739, %v859
        %v861 = vrot.slane %v844, %v860
        %v862 = vlaneseq
        %v863 = vshrl.u32 %v862, 7
        %v864 = vsub.s32 %v739, %v863
        %v865 = vrot.slane %v845, %v864
        %v866 = vsel %vm756, %v853, %v853
        %v867 = vsel %vm758, %v853, %v866
        %v868 = vsel %vm760, %v853, %v867
        %v869 = vsel %vm762, %v853, %v868
        %v870 = vsel %vm764, %v853, %v869
        %v871 = vsel %vm766, %v853, %v870
        %v872 = vsel %vm756, %v857, %v857
        %v873 = vsel %vm758, %v857, %v872
        %v874 = vsel %vm760, %v857, %v873
        %v875 = vsel %vm762, %v857, %v874
        %v876 = vsel %vm764, %v857, %v875
        %v877 = vsel %vm766, %v857, %v876
        %v878 = vsel %vm756, %v861, %v861
        %v879 = vsel %vm758, %v861, %v878
        %v880 = vsel %vm760, %v861, %v879
        %v881 = vsel %vm762, %v861, %v880
        %v882 = vsel %vm764, %v861, %v881
        %v883 = vsel %vm766, %v861, %v882
        %v884 = vsel %vm756, %v865, %v865
        %v885 = vsel %vm758, %v865, %v884
        %v886 = vsel %vm760, %v865, %v885
        %v887 = vsel %vm762, %v865, %v886
        %v888 = vsel %vm764, %v865, %v887
        %v889 = vsel %vm766, %v865, %v888
        %v894 = vadd.f32 %v546, %v871
        %v895 = vadd.f32 %v547, %v877
        %v896 = vadd.f32 %v548, %v883
        %v897 = vadd.f32 %v549, %v889
        %v898 = vsel %vm365, %v894, -inf
        %899 = vmax.xlane.f32.xlu0 %v898
        %v900 = vpop.xlane.xlu0 %899
        %v901 = vsel %vm365, %v895, -inf
        %902 = vmax.xlane.f32.xlu0 %v901
        %v903 = vpop.xlane.xlu0 %902
        %v904 = vsel %vm365, %v896, -inf
        %905 = vmax.xlane.f32.xlu0 %v904
        %v906 = vpop.xlane.xlu0 %905
        %v907 = vsel %vm365, %v897, -inf
        %908 = vmax.xlane.f32.xlu0 %v907
        %v909 = vpop.xlane.xlu0 %908
        %v910 = vsub.f32 %v894, %v900
        %v911 = vsub.f32 %v895, %v903
        %v912 = vsub.f32 %v896, %v906
        %v913 = vsub.f32 %v897, %v909
        %v914 = vmul.f32 %v910, 1.442695
        %v915 = vpow.pop %v914
        %v916 = vmul.f32 %v911, 1.442695
        %v917 = vpow.pop %v916
        %v918 = vmul.f32 %v912, 1.442695
        %v919 = vpow.pop %v918
        %v920 = vmul.f32 %v913, 1.442695
        %v921 = vpow.pop %v920
        %v922 = vsel %vm365, %v915, 0.0
        %923 = vadd.xlane.f32.xlu0 %v922
        %v924 = vpop.xlane.xlu0 %923
        %v925 = vsel %vm365, %v917, 0.0
        %926 = vadd.xlane.f32.xlu0 %v925
        %v927 = vpop.xlane.xlu0 %926
        %v928 = vsel %vm365, %v919, 0.0
        %929 = vadd.xlane.f32.xlu0 %v928
        %v930 = vpop.xlane.xlu0 %929
        %v931 = vsel %vm365, %v921, 0.0
        %932 = vadd.xlane.f32.xlu0 %v931
        %v933 = vpop.xlane.xlu0 %932
        %v934 = vlog2.pop %v924
        %v935 = vmul.f32 %v934, 0.6931472
        %v936 = vlog2.pop %v927
        %v937 = vmul.f32 %v936, 0.6931472
        %v938 = vlog2.pop %v930
        %v939 = vmul.f32 %v938, 0.6931472
        %v940 = vlog2.pop %v933
        %v941 = vmul.f32 %v940, 0.6931472
        %v942 = vadd.f32 %v900, %v935
        %v943 = vadd.f32 %v903, %v937
        %v944 = vadd.f32 %v906, %v939
        %v945 = vadd.f32 %v909, %v941
        %v946 = vsub.f32 -2.0794415, %v942
        %v947 = vsub.f32 -2.0794415, %v943
        %v948 = vsub.f32 -2.0794415, %v944
        %v949 = vsub.f32 -2.0794415, %v945
        %v954 = vlaneseq
        %v955 = vshrl.u32 %v954, 7
        %v956 = vsub.s32 %v739, %v955
        %v957 = vrot.slane %v946, %v956
        %v958 = vlaneseq
        %v959 = vshrl.u32 %v958, 7
        %v960 = vsub.s32 %v739, %v959
        %v961 = vrot.slane %v947, %v960
        %v962 = vlaneseq
        %v963 = vshrl.u32 %v962, 7
        %v964 = vsub.s32 %v739, %v963
        %v965 = vrot.slane %v948, %v964
        %v966 = vlaneseq
        %v967 = vshrl.u32 %v966, 7
        %v968 = vsub.s32 %v739, %v967
        %v969 = vrot.slane %v949, %v968
        %v970 = vsel %vm756, %v957, %v957
        %v971 = vsel %vm758, %v957, %v970
        %v972 = vsel %vm760, %v957, %v971
        %v973 = vsel %vm762, %v957, %v972
        %v974 = vsel %vm764, %v957, %v973
        %v975 = vsel %vm766, %v957, %v974
        %v976 = vsel %vm756, %v961, %v961
        %v977 = vsel %vm758, %v961, %v976
        %v978 = vsel %vm760, %v961, %v977
        %v979 = vsel %vm762, %v961, %v978
        %v980 = vsel %vm764, %v961, %v979
        %v981 = vsel %vm766, %v961, %v980
        %v982 = vsel %vm756, %v965, %v965
        %v983 = vsel %vm758, %v965, %v982
        %v984 = vsel %vm760, %v965, %v983
        %v985 = vsel %vm762, %v965, %v984
        %v986 = vsel %vm764, %v965, %v985
        %v987 = vsel %vm766, %v965, %v986
        %v988 = vsel %vm756, %v969, %v969
        %v989 = vsel %vm758, %v969, %v988
        %v990 = vsel %vm760, %v969, %v989
        %v991 = vsel %vm762, %v969, %v990
        %v992 = vsel %vm764, %v969, %v991
        %v993 = vsel %vm766, %v969, %v992
        %v998 = vadd.f32 %v566, %v975
        %v999 = vadd.f32 %v598, %v981
        %v1000 = vadd.f32 %v630, %v987
        %v1001 = vadd.f32 %v662, %v993
        %v1002 = vsel %vm365, %v998, -inf
        %1003 = vmax.xlane.f32.xlu0 %v1002
        %v1004 = vpop.xlane.xlu0 %1003
        %v1005 = vsel %vm365, %v999, -inf
        %1006 = vmax.xlane.f32.xlu0 %v1005
        %v1007 = vpop.xlane.xlu0 %1006
        %v1008 = vsel %vm365, %v1000, -inf
        %1009 = vmax.xlane.f32.xlu0 %v1008
        %v1010 = vpop.xlane.xlu0 %1009
        %v1011 = vsel %vm365, %v1001, -inf
        %1012 = vmax.xlane.f32.xlu0 %v1011
        %v1013 = vpop.xlane.xlu0 %1012
        %v1014 = vsub.f32 %v998, %v1004
        %v1015 = vsub.f32 %v999, %v1007
        %v1016 = vsub.f32 %v1000, %v1010
        %v1017 = vsub.f32 %v1001, %v1013
        %v1018 = vmul.f32 %v1014, 1.442695
        %v1019 = vpow.pop %v1018
        %v1020 = vmul.f32 %v1015, 1.442695
        %v1021 = vpow.pop %v1020
        %v1022 = vmul.f32 %v1016, 1.442695
        %v1023 = vpow.pop %v1022
        %v1024 = vmul.f32 %v1017, 1.442695
        %v1025 = vpow.pop %v1024
        %v1026 = vsel %vm365, %v1019, 0.0
        %1027 = vadd.xlane.f32.xlu0 %v1026
        %v1028 = vpop.xlane.xlu0 %1027
        %v1029 = vsel %vm365, %v1021, 0.0
        %1030 = vadd.xlane.f32.xlu0 %v1029
        %v1031 = vpop.xlane.xlu0 %1030
        %v1032 = vsel %vm365, %v1023, 0.0
        %1033 = vadd.xlane.f32.xlu0 %v1032
        %v1034 = vpop.xlane.xlu0 %1033
        %v1035 = vsel %vm365, %v1025, 0.0
        %1036 = vadd.xlane.f32.xlu0 %v1035
        %v1037 = vpop.xlane.xlu0 %1036
        %v1038 = vlog2.pop %v1028
        %v1039 = vmul.f32 %v1038, 0.6931472
        %v1040 = vlog2.pop %v1031
        %v1041 = vmul.f32 %v1040, 0.6931472
        %v1042 = vlog2.pop %v1034
        %v1043 = vmul.f32 %v1042, 0.6931472
        %v1044 = vlog2.pop %v1037
        %v1045 = vmul.f32 %v1044, 0.6931472
        %v1046 = vadd.f32 %v1004, %v1039
        %v1047 = vadd.f32 %v1007, %v1041
        %v1048 = vadd.f32 %v1010, %v1043
        %v1049 = vadd.f32 %v1013, %v1045
        %v1050 = vsub.f32 -2.0794415, %v1046
        %v1051 = vsub.f32 -2.0794415, %v1047
        %v1052 = vsub.f32 -2.0794415, %v1048
        %v1053 = vsub.f32 -2.0794415, %v1049
        %v1058 = vlaneseq
        %v1059 = vshrl.u32 %v1058, 7
        %v1060 = vsub.s32 %v739, %v1059
        %v1061 = vrot.slane %v1050, %v1060
        %v1062 = vlaneseq
        %v1063 = vshrl.u32 %v1062, 7
        %v1064 = vsub.s32 %v739, %v1063
        %v1065 = vrot.slane %v1051, %v1064
        %v1066 = vlaneseq
        %v1067 = vshrl.u32 %v1066, 7
        %v1068 = vsub.s32 %v739, %v1067
        %v1069 = vrot.slane %v1052, %v1068
        %v1070 = vlaneseq
        %v1071 = vshrl.u32 %v1070, 7
        %v1072 = vsub.s32 %v739, %v1071
        %v1073 = vrot.slane %v1053, %v1072
        %v1074 = vsel %vm756, %v1061, %v1061
        %v1075 = vsel %vm758, %v1061, %v1074
        %v1076 = vsel %vm760, %v1061, %v1075
        %v1077 = vsel %vm762, %v1061, %v1076
        %v1078 = vsel %vm764, %v1061, %v1077
        %v1079 = vsel %vm766, %v1061, %v1078
        %v1080 = vsel %vm756, %v1065, %v1065
        %v1081 = vsel %vm758, %v1065, %v1080
        %v1082 = vsel %vm760, %v1065, %v1081
        %v1083 = vsel %vm762, %v1065, %v1082
        %v1084 = vsel %vm764, %v1065, %v1083
        %v1085 = vsel %vm766, %v1065, %v1084
        %v1086 = vsel %vm756, %v1069, %v1069
        %v1087 = vsel %vm758, %v1069, %v1086
        %v1088 = vsel %vm760, %v1069, %v1087
        %v1089 = vsel %vm762, %v1069, %v1088
        %v1090 = vsel %vm764, %v1069, %v1089
        %v1091 = vsel %vm766, %v1069, %v1090
        %v1092 = vsel %vm756, %v1073, %v1073
        %v1093 = vsel %vm758, %v1073, %v1092
        %v1094 = vsel %vm760, %v1073, %v1093
        %v1095 = vsel %vm762, %v1073, %v1094
        %v1096 = vsel %vm764, %v1073, %v1095
        %v1097 = vsel %vm766, %v1073, %v1096
        %v1102 = vadd.f32 %v546, %v1079
        %v1103 = vadd.f32 %v547, %v1085
        %v1104 = vadd.f32 %v548, %v1091
        %v1105 = vadd.f32 %v549, %v1097
        %v1106 = vsel %vm365, %v1102, -inf
        %1107 = vmax.xlane.f32.xlu0 %v1106
        %v1108 = vpop.xlane.xlu0 %1107
        %v1109 = vsel %vm365, %v1103, -inf
        %1110 = vmax.xlane.f32.xlu0 %v1109
        %v1111 = vpop.xlane.xlu0 %1110
        %v1112 = vsel %vm365, %v1104, -inf
        %1113 = vmax.xlane.f32.xlu0 %v1112
        %v1114 = vpop.xlane.xlu0 %1113
        %v1115 = vsel %vm365, %v1105, -inf
        %1116 = vmax.xlane.f32.xlu0 %v1115
        %v1117 = vpop.xlane.xlu0 %1116
        %v1118 = vsub.f32 %v1102, %v1108
        %v1119 = vsub.f32 %v1103, %v1111
        %v1120 = vsub.f32 %v1104, %v1114
        %v1121 = vsub.f32 %v1105, %v1117
        %v1122 = vmul.f32 %v1118, 1.442695
        %v1123 = vpow.pop %v1122
        %v1124 = vmul.f32 %v1119, 1.442695
        %v1125 = vpow.pop %v1124
        %v1126 = vmul.f32 %v1120, 1.442695
        %v1127 = vpow.pop %v1126
        %v1128 = vmul.f32 %v1121, 1.442695
        %v1129 = vpow.pop %v1128
        %v1130 = vsel %vm365, %v1123, 0.0
        %1131 = vadd.xlane.f32.xlu0 %v1130
        %v1132 = vpop.xlane.xlu0 %1131
        %v1133 = vsel %vm365, %v1125, 0.0
        %1134 = vadd.xlane.f32.xlu0 %v1133
        %v1135 = vpop.xlane.xlu0 %1134
        %v1136 = vsel %vm365, %v1127, 0.0
        %1137 = vadd.xlane.f32.xlu0 %v1136
        %v1138 = vpop.xlane.xlu0 %1137
        %v1139 = vsel %vm365, %v1129, 0.0
        %1140 = vadd.xlane.f32.xlu0 %v1139
        %v1141 = vpop.xlane.xlu0 %1140
        %v1142 = vlog2.pop %v1132
        %v1143 = vmul.f32 %v1142, 0.6931472
        %v1144 = vlog2.pop %v1135
        %v1145 = vmul.f32 %v1144, 0.6931472
        %v1146 = vlog2.pop %v1138
        %v1147 = vmul.f32 %v1146, 0.6931472
        %v1148 = vlog2.pop %v1141
        %v1149 = vmul.f32 %v1148, 0.6931472
        %v1150 = vadd.f32 %v1108, %v1143
        %v1151 = vadd.f32 %v1111, %v1145
        %v1152 = vadd.f32 %v1114, %v1147
        %v1153 = vadd.f32 %v1117, %v1149
        %v1154 = vsub.f32 -2.0794415, %v1150
        %v1155 = vsub.f32 -2.0794415, %v1151
        %v1156 = vsub.f32 -2.0794415, %v1152
        %v1157 = vsub.f32 -2.0794415, %v1153
        %v1162 = vlaneseq
        %v1163 = vshrl.u32 %v1162, 7
        %v1164 = vsub.s32 %v739, %v1163
        %v1165 = vrot.slane %v1154, %v1164
        %v1166 = vlaneseq
        %v1167 = vshrl.u32 %v1166, 7
        %v1168 = vsub.s32 %v739, %v1167
        %v1169 = vrot.slane %v1155, %v1168
        %v1170 = vlaneseq
        %v1171 = vshrl.u32 %v1170, 7
        %v1172 = vsub.s32 %v739, %v1171
        %v1173 = vrot.slane %v1156, %v1172
        %v1174 = vlaneseq
        %v1175 = vshrl.u32 %v1174, 7
        %v1176 = vsub.s32 %v739, %v1175
        %v1177 = vrot.slane %v1157, %v1176
        %v1178 = vsel %vm756, %v1165, %v1165
        %v1179 = vsel %vm758, %v1165, %v1178
        %v1180 = vsel %vm760, %v1165, %v1179
        %v1181 = vsel %vm762, %v1165, %v1180
        %v1182 = vsel %vm764, %v1165, %v1181
        %v1183 = vsel %vm766, %v1165, %v1182
        %v1184 = vsel %vm756, %v1169, %v1169
        %v1185 = vsel %vm758, %v1169, %v1184
        %v1186 = vsel %vm760, %v1169, %v1185
        %v1187 = vsel %vm762, %v1169, %v1186
        %v1188 = vsel %vm764, %v1169, %v1187
        %v1189 = vsel %vm766, %v1169, %v1188
        %v1190 = vsel %vm756, %v1173, %v1173
        %v1191 = vsel %vm758, %v1173, %v1190
        %v1192 = vsel %vm760, %v1173, %v1191
        %v1193 = vsel %vm762, %v1173, %v1192
        %v1194 = vsel %vm764, %v1173, %v1193
        %v1195 = vsel %vm766, %v1173, %v1194
        %v1196 = vsel %vm756, %v1177, %v1177
        %v1197 = vsel %vm758, %v1177, %v1196
        %v1198 = vsel %vm760, %v1177, %v1197
        %v1199 = vsel %vm762, %v1177, %v1198
        %v1200 = vsel %vm764, %v1177, %v1199
        %v1201 = vsel %vm766, %v1177, %v1200
        %v1206 = vadd.f32 %v566, %v1183
        %v1207 = vadd.f32 %v598, %v1189
        %v1208 = vadd.f32 %v630, %v1195
        %v1209 = vadd.f32 %v662, %v1201
        %v1210 = vsel %vm365, %v1206, -inf
        %1211 = vmax.xlane.f32.xlu0 %v1210
        %v1212 = vpop.xlane.xlu0 %1211
        %v1213 = vsel %vm365, %v1207, -inf
        %1214 = vmax.xlane.f32.xlu0 %v1213
        %v1215 = vpop.xlane.xlu0 %1214
        %v1216 = vsel %vm365, %v1208, -inf
        %1217 = vmax.xlane.f32.xlu0 %v1216
        %v1218 = vpop.xlane.xlu0 %1217
        %v1219 = vsel %vm365, %v1209, -inf
        %1220 = vmax.xlane.f32.xlu0 %v1219
        %v1221 = vpop.xlane.xlu0 %1220
        %v1222 = vsub.f32 %v1206, %v1212
        %v1223 = vsub.f32 %v1207, %v1215
        %v1224 = vsub.f32 %v1208, %v1218
        %v1225 = vsub.f32 %v1209, %v1221
        %v1226 = vmul.f32 %v1222, 1.442695
        %v1227 = vpow.pop %v1226
        %v1228 = vmul.f32 %v1223, 1.442695
        %v1229 = vpow.pop %v1228
        %v1230 = vmul.f32 %v1224, 1.442695
        %v1231 = vpow.pop %v1230
        %v1232 = vmul.f32 %v1225, 1.442695
        %v1233 = vpow.pop %v1232
        %v1234 = vsel %vm365, %v1227, 0.0
        %1235 = vadd.xlane.f32.xlu0 %v1234
        %v1236 = vpop.xlane.xlu0 %1235
        %v1237 = vsel %vm365, %v1229, 0.0
        %1238 = vadd.xlane.f32.xlu0 %v1237
        %v1239 = vpop.xlane.xlu0 %1238
        %v1240 = vsel %vm365, %v1231, 0.0
        %1241 = vadd.xlane.f32.xlu0 %v1240
        %v1242 = vpop.xlane.xlu0 %1241
        %v1243 = vsel %vm365, %v1233, 0.0
        %1244 = vadd.xlane.f32.xlu0 %v1243
        %v1245 = vpop.xlane.xlu0 %1244
        %v1246 = vlog2.pop %v1236
        %v1247 = vmul.f32 %v1246, 0.6931472
        %v1248 = vlog2.pop %v1239
        %v1249 = vmul.f32 %v1248, 0.6931472
        %v1250 = vlog2.pop %v1242
        %v1251 = vmul.f32 %v1250, 0.6931472
        %v1252 = vlog2.pop %v1245
        %v1253 = vmul.f32 %v1252, 0.6931472
        %v1254 = vadd.f32 %v1212, %v1247
        %v1255 = vadd.f32 %v1215, %v1249
        %v1256 = vadd.f32 %v1218, %v1251
        %v1257 = vadd.f32 %v1221, %v1253
        %v1258 = vsub.f32 -2.0794415, %v1254
        %v1259 = vsub.f32 -2.0794415, %v1255
        %v1260 = vsub.f32 -2.0794415, %v1256
        %v1261 = vsub.f32 -2.0794415, %v1257
        %v1262 = vadd.f32 %v546, %v1154
        %v1263 = vadd.f32 %v547, %v1155
        %v1264 = vadd.f32 %v548, %v1156
        %v1265 = vadd.f32 %v549, %v1157
        %v1270 = vlaneseq
        %v1271 = vshrl.u32 %v1270, 7
        %v1272 = vsub.s32 %v739, %v1271
        %v1273 = vrot.slane %v1258, %v1272
        %v1274 = vlaneseq
        %v1275 = vshrl.u32 %v1274, 7
        %v1276 = vsub.s32 %v739, %v1275
        %v1277 = vrot.slane %v1259, %v1276
        %v1278 = vlaneseq
        %v1279 = vshrl.u32 %v1278, 7
        %v1280 = vsub.s32 %v739, %v1279
        %v1281 = vrot.slane %v1260, %v1280
        %v1282 = vlaneseq
        %v1283 = vshrl.u32 %v1282, 7
        %v1284 = vsub.s32 %v739, %v1283
        %v1285 = vrot.slane %v1261, %v1284
        %v1286 = vsel %vm756, %v1273, %v1273
        %v1287 = vsel %vm758, %v1273, %v1286
        %v1288 = vsel %vm760, %v1273, %v1287
        %v1289 = vsel %vm762, %v1273, %v1288
        %v1290 = vsel %vm764, %v1273, %v1289
        %v1291 = vsel %vm766, %v1273, %v1290
        %v1292 = vsel %vm756, %v1277, %v1277
        %v1293 = vsel %vm758, %v1277, %v1292
        %v1294 = vsel %vm760, %v1277, %v1293
        %v1295 = vsel %vm762, %v1277, %v1294
        %v1296 = vsel %vm764, %v1277, %v1295
        %v1297 = vsel %vm766, %v1277, %v1296
        %v1298 = vsel %vm756, %v1281, %v1281
        %v1299 = vsel %vm758, %v1281, %v1298
        %v1300 = vsel %vm760, %v1281, %v1299
        %v1301 = vsel %vm762, %v1281, %v1300
        %v1302 = vsel %vm764, %v1281, %v1301
        %v1303 = vsel %vm766, %v1281, %v1302
        %v1304 = vsel %vm756, %v1285, %v1285
        %v1305 = vsel %vm758, %v1285, %v1304
        %v1306 = vsel %vm760, %v1285, %v1305
        %v1307 = vsel %vm762, %v1285, %v1306
        %v1308 = vsel %vm764, %v1285, %v1307
        %v1309 = vsel %vm766, %v1285, %v1308
        %v1314 = vadd.f32 %v1262, %v1291
        %v1315 = vadd.f32 %v1263, %v1297
        %v1316 = vadd.f32 %v1264, %v1303
        %v1317 = vadd.f32 %v1265, %v1309
        %v1318 = vmul.f32 %v1314, 1.442695
        %v1319 = vpow.pop %v1318
        %v1320 = vmul.f32 %v1315, 1.442695
        %v1321 = vpow.pop %v1320
        %v1322 = vmul.f32 %v1316, 1.442695
        %v1323 = vpow.pop %v1322
        %v1324 = vmul.f32 %v1317, 1.442695
        %v1325 = vpow.pop %v1324
        %v1326 = vmul.f32 %v1319, 8.0
        %v1327 = vmul.f32 %v1321, 8.0
        %v1328 = vmul.f32 %v1323, 8.0
        %v1329 = vmul.f32 %v1325, 8.0
        %v1330 = vpack.c.bf16 %v1326, %v1326
        %v1331 = vpack.c.bf16 %v1327, %v1327
        %v1332 = vpack.c.bf16 %v1328, %v1328
        %v1333 = vpack.c.bf16 %v1329, %v1329
        %1335 = vrot.lane.b32.xlu0 %v361, 96
        %v1336 = vpop.permute.xlu0 %1335
        %v1338 = vsel %vm365, %v1330, 0
        %vm1340 = vcmask 1043456
        %v1342 = vsel %vm1340, %v1336, 0
        %1344 = vmatprep.subr.bf16.mxu0 0
        %1345 = vmatpush1.bf16.msra.mxu0 0
        %1346 = vmatprep.subr.bf16.mxu0 0
        %1347 = vmatpush1.bf16.msra.mxu0 0
        %1348 = vmatprep.subr.bf16.mxu0 0
        %1349 = vmatpush1.bf16.msra.mxu0 0
        %1350 = vmatprep.subr.bf16.mxu0 0
        %1351 = vmatpush1.bf16.msra.mxu0 0
        %1352 = vmatprep.subr.bf16.mxu0 0
        %1353 = vmatpush1.bf16.msra.mxu0 0
        %1354 = vmatprep.subr.bf16.mxu0 0
        %1355 = vmatpush1.bf16.msra.mxu0 0
        %1356 = vmatprep.subr.bf16.mxu0 0
        %1357 = vmatpush1.bf16.msra.mxu0 0
        %1358 = vmatprep.subr.bf16.mxu0 0
        %1359 = vmatpush1.bf16.msra.mxu0 %v1342
        %1360 = vmatprep.subr.bf16.mxu0 0
        %1361 = vmatpush2.bf16.msra.mxu0 0
        %1362 = vmatprep.subr.bf16.mxu0 0
        %1363 = vmatpush2.bf16.msra.mxu0 0
        %1364 = vmatprep.subr.bf16.mxu0 0
        %1365 = vmatpush2.bf16.msra.mxu0 0
        %1366 = vmatprep.subr.bf16.mxu0 0
        %1367 = vmatpush2.bf16.msra.mxu0 0
        %1368 = vmatprep.subr.bf16.mxu0 0
        %1369 = vmatpush2.bf16.msra.mxu0 0
        %1370 = vmatprep.subr.bf16.mxu0 0
        %1371 = vmatpush2.bf16.msra.mxu0 0
        %1372 = vmatprep.subr.bf16.mxu0 0
        %1373 = vmatpush2.bf16.msra.mxu0 0
        %1374 = vmatprep.subr.bf16.mxu0 0
        %1375 = vmatpush2.bf16.msra.mxu0 0
        %1376 = vmatprep.mubr.bf16.mxu0 0
        %1377 = vmatmul.mubr.bf16.gmra.mxu0 %v1338
        %v1378 = vpop.f32.mrf.mxu0
        %v1379 = vadd.f32 0.0, %v1378
        %v1380 = vpop.f32.mrf.mxu0
        %v1381 = vpop.f32.mrf.mxu0
        %v1382 = vpop.f32.mrf.mxu0
        %1383 = vdwg.mxu0
        %1385 = vrot.lane.b32.xlu0 %v362, 96
        %v1386 = vpop.permute.xlu0 %1385
        %v1388 = vsel %vm365, %v1331, 0
        %v1391 = vsel %vm1340, %v1386, 0
        %1393 = vmatprep.subr.bf16.mxu0 0
        %1394 = vmatpush1.bf16.msra.mxu0 0
        %1395 = vmatprep.subr.bf16.mxu0 0
        %1396 = vmatpush1.bf16.msra.mxu0 0
        %1397 = vmatprep.subr.bf16.mxu0 0
        %1398 = vmatpush1.bf16.msra.mxu0 0
        %1399 = vmatprep.subr.bf16.mxu0 0
        %1400 = vmatpush1.bf16.msra.mxu0 0
        %1401 = vmatprep.subr.bf16.mxu0 0
        %1402 = vmatpush1.bf16.msra.mxu0 0
        %1403 = vmatprep.subr.bf16.mxu0 0
        %1404 = vmatpush1.bf16.msra.mxu0 0
        %1405 = vmatprep.subr.bf16.mxu0 0
        %1406 = vmatpush1.bf16.msra.mxu0 0
        %1407 = vmatprep.subr.bf16.mxu0 0
        %1408 = vmatpush1.bf16.msra.mxu0 %v1391
        %1409 = vmatprep.subr.bf16.mxu0 0
        %1410 = vmatpush2.bf16.msra.mxu0 0
        %1411 = vmatprep.subr.bf16.mxu0 0
        %1412 = vmatpush2.bf16.msra.mxu0 0
        %1413 = vmatprep.subr.bf16.mxu0 0
        %1414 = vmatpush2.bf16.msra.mxu0 0
        %1415 = vmatprep.subr.bf16.mxu0 0
        %1416 = vmatpush2.bf16.msra.mxu0 0
        %1417 = vmatprep.subr.bf16.mxu0 0
        %1418 = vmatpush2.bf16.msra.mxu0 0
        %1419 = vmatprep.subr.bf16.mxu0 0
        %1420 = vmatpush2.bf16.msra.mxu0 0
        %1421 = vmatprep.subr.bf16.mxu0 0
        %1422 = vmatpush2.bf16.msra.mxu0 0
        %1423 = vmatprep.subr.bf16.mxu0 0
        %1424 = vmatpush2.bf16.msra.mxu0 0
        %1425 = vmatprep.mubr.bf16.mxu0 0
        %1426 = vmatmul.mubr.bf16.gmra.mxu0 %v1388
        %v1427 = vpop.f32.mrf.mxu0
        %v1428 = vadd.f32 0.0, %v1427
        %v1429 = vpop.f32.mrf.mxu0
        %v1430 = vpop.f32.mrf.mxu0
        %v1431 = vpop.f32.mrf.mxu0
        %1432 = vdwg.mxu0
        %1434 = vrot.lane.b32.xlu0 %v363, 96
        %v1435 = vpop.permute.xlu0 %1434
        %v1437 = vsel %vm365, %v1332, 0
        %v1440 = vsel %vm1340, %v1435, 0
        %1442 = vmatprep.subr.bf16.mxu0 0
        %1443 = vmatpush1.bf16.msra.mxu0 0
        %1444 = vmatprep.subr.bf16.mxu0 0
        %1445 = vmatpush1.bf16.msra.mxu0 0
        %1446 = vmatprep.subr.bf16.mxu0 0
        %1447 = vmatpush1.bf16.msra.mxu0 0
        %1448 = vmatprep.subr.bf16.mxu0 0
        %1449 = vmatpush1.bf16.msra.mxu0 0
        %1450 = vmatprep.subr.bf16.mxu0 0
        %1451 = vmatpush1.bf16.msra.mxu0 0
        %1452 = vmatprep.subr.bf16.mxu0 0
        %1453 = vmatpush1.bf16.msra.mxu0 0
        %1454 = vmatprep.subr.bf16.mxu0 0
        %1455 = vmatpush1.bf16.msra.mxu0 0
        %1456 = vmatprep.subr.bf16.mxu0 0
        %1457 = vmatpush1.bf16.msra.mxu0 %v1440
        %1458 = vmatprep.subr.bf16.mxu0 0
        %1459 = vmatpush2.bf16.msra.mxu0 0
        %1460 = vmatprep.subr.bf16.mxu0 0
        %1461 = vmatpush2.bf16.msra.mxu0 0
        %1462 = vmatprep.subr.bf16.mxu0 0
        %1463 = vmatpush2.bf16.msra.mxu0 0
        %1464 = vmatprep.subr.bf16.mxu0 0
        %1465 = vmatpush2.bf16.msra.mxu0 0
        %1466 = vmatprep.subr.bf16.mxu0 0
        %1467 = vmatpush2.bf16.msra.mxu0 0
        %1468 = vmatprep.subr.bf16.mxu0 0
        %1469 = vmatpush2.bf16.msra.mxu0 0
        %1470 = vmatprep.subr.bf16.mxu0 0
        %1471 = vmatpush2.bf16.msra.mxu0 0
        %1472 = vmatprep.subr.bf16.mxu0 0
        %1473 = vmatpush2.bf16.msra.mxu0 0
        %1474 = vmatprep.mubr.bf16.mxu0 0
        %1475 = vmatmul.mubr.bf16.gmra.mxu0 %v1437
        %v1476 = vpop.f32.mrf.mxu0
        %v1477 = vadd.f32 0.0, %v1476
        %v1478 = vpop.f32.mrf.mxu0
        %v1479 = vpop.f32.mrf.mxu0
        %v1480 = vpop.f32.mrf.mxu0
        %1481 = vdwg.mxu0
        %1483 = vrot.lane.b32.xlu0 %v364, 96
        %v1484 = vpop.permute.xlu0 %1483
        %v1486 = vsel %vm365, %v1333, 0
        %v1489 = vsel %vm1340, %v1484, 0
        %1491 = vmatprep.subr.bf16.mxu0 0
        %1492 = vmatpush1.bf16.msra.mxu0 0
        %1493 = vmatprep.subr.bf16.mxu0 0
        %1494 = vmatpush1.bf16.msra.mxu0 0
        %1495 = vmatprep.subr.bf16.mxu0 0
        %1496 = vmatpush1.bf16.msra.mxu0 0
        %1497 = vmatprep.subr.bf16.mxu0 0
        %1498 = vmatpush1.bf16.msra.mxu0 0
        %1499 = vmatprep.subr.bf16.mxu0 0
        %1500 = vmatpush1.bf16.msra.mxu0 0
        %1501 = vmatprep.subr.bf16.mxu0 0
        %1502 = vmatpush1.bf16.msra.mxu0 0
        %1503 = vmatprep.subr.bf16.mxu0 0
        %1504 = vmatpush1.bf16.msra.mxu0 0
        %1505 = vmatprep.subr.bf16.mxu0 0
        %1506 = vmatpush1.bf16.msra.mxu0 %v1489
        %1507 = vmatprep.subr.bf16.mxu0 0
        %1508 = vmatpush2.bf16.msra.mxu0 0
        %1509 = vmatprep.subr.bf16.mxu0 0
        %1510 = vmatpush2.bf16.msra.mxu0 0
        %1511 = vmatprep.subr.bf16.mxu0 0
        %1512 = vmatpush2.bf16.msra.mxu0 0
        %1513 = vmatprep.subr.bf16.mxu0 0
        %1514 = vmatpush2.bf16.msra.mxu0 0
        %1515 = vmatprep.subr.bf16.mxu0 0
        %1516 = vmatpush2.bf16.msra.mxu0 0
        %1517 = vmatprep.subr.bf16.mxu0 0
        %1518 = vmatpush2.bf16.msra.mxu0 0
        %1519 = vmatprep.subr.bf16.mxu0 0
        %1520 = vmatpush2.bf16.msra.mxu0 0
        %1521 = vmatprep.subr.bf16.mxu0 0
        %1522 = vmatpush2.bf16.msra.mxu0 0
        %1523 = vmatprep.mubr.bf16.mxu0 0
        %1524 = vmatmul.mubr.bf16.gmra.mxu0 %v1486
        %v1525 = vpop.f32.mrf.mxu0
        %v1526 = vadd.f32 0.0, %v1525
        %v1527 = vpop.f32.mrf.mxu0
        %v1528 = vpop.f32.mrf.mxu0
        %v1529 = vpop.f32.mrf.mxu0
        %1530 = vdwg.mxu0
        %1532 = vrot.lane.b32.xlu0 %v1428, 8
        %v1533 = vpop.permute.xlu0 %1532
        %1536 = vrot.lane.b32.xlu0 %v1477, 16
        %v1537 = vpop.permute.xlu0 %1536
        %1540 = vrot.lane.b32.xlu0 %v1526, 24
        %v1541 = vpop.permute.xlu0 %1540
        %v1543 = vsel %vm365, %v1379, %v1533
        %vm1544 = vcmask 130048
        %v1545 = vsel %vm1544, %v1543, %v1537
        %vm1546 = vcmask 195584
        %v1547 = vsel %vm1546, %v1545, %v1541
        %v1548 = vpack.c.bf16 %v1547, %v1547
        %v1549 = vld [vmem:[%s3] sm:$0xf]
        %v1550 = vld [vmem:[%s3 + $0x4] sm:$0xf]
        %v1551 = vld [vmem:[%s3 + $0x8] sm:$0xf]
        %v1552 = vld [vmem:[%s3 + $0xc] sm:$0xf]
        %v1553 = vld [vmem:[%s4] sm:$0x1]
        %v1555 = vlaneseq
        %v1556 = vshrl.u32 %v1555, 7
        %v1557 = vsub.s32 0, %v1556
        %v1558 = vrot.slane %v1553, %v1557
        %v1564 = vunpack.c.l.b16 %v1549
        %v1565 = vunpack.c.l.b16 %v1550
        %v1566 = vunpack.c.l.b16 %v1551
        %v1567 = vunpack.c.l.b16 %v1552
        %v1568 = vpack.c.b16 %v1565, %v1564
        %v1569 = vpack.c.b16 %v1567, %v1566
        %v1573 = vsel %vm285, %v1548, 0
        %1575 = vmatprep.subr.bf16.mxu0 0
        %1576 = vmatpush1.bf16.msra.mxu0 0
        %1577 = vmatprep.subr.bf16.mxu0 0
        %1578 = vmatpush1.bf16.msra.mxu0 0
        %1579 = vmatprep.subr.bf16.mxu0 0
        %1580 = vmatpush1.bf16.msra.mxu0 0
        %1581 = vmatprep.subr.bf16.mxu0 0
        %1582 = vmatpush1.bf16.msra.mxu0 0
        %1583 = vmatprep.subr.bf16.mxu0 0
        %1584 = vmatpush1.bf16.msra.mxu0 0
        %1585 = vmatprep.subr.bf16.mxu0 0
        %1586 = vmatpush1.bf16.msra.mxu0 0
        %1587 = vmatprep.subr.bf16.mxu0 0
        %1588 = vmatpush1.bf16.msra.mxu0 %v1569
        %1589 = vmatprep.subr.bf16.mxu0 0
        %1590 = vmatpush1.bf16.msra.mxu0 %v1568
        %1591 = vmatprep.subr.bf16.mxu0 0
        %1592 = vmatpush2.bf16.msra.mxu0 0
        %1593 = vmatprep.subr.bf16.mxu0 0
        %1594 = vmatpush2.bf16.msra.mxu0 0
        %1595 = vmatprep.subr.bf16.mxu0 0
        %1596 = vmatpush2.bf16.msra.mxu0 0
        %1597 = vmatprep.subr.bf16.mxu0 0
        %1598 = vmatpush2.bf16.msra.mxu0 0
        %1599 = vmatprep.subr.bf16.mxu0 0
        %1600 = vmatpush2.bf16.msra.mxu0 0
        %1601 = vmatprep.subr.bf16.mxu0 0
        %1602 = vmatpush2.bf16.msra.mxu0 0
        %1603 = vmatprep.subr.bf16.mxu0 0
        %1604 = vmatpush2.bf16.msra.mxu0 0
        %1605 = vmatprep.subr.bf16.mxu0 0
        %1606 = vmatpush2.bf16.msra.mxu0 0
        %1607 = vmatprep.mubr.bf16.mxu0 0
        %1608 = vmatmul.mubr.bf16.gmra.mxu0 %v1573
        %v1609 = vpop.f32.mrf.mxu0
        %v1610 = vadd.f32 %v1558, %v1609
        %v1611 = vpop.f32.mrf.mxu0
        %v1612 = vpop.f32.mrf.mxu0
        %v1613 = vpop.f32.mrf.mxu0
        %1614 = vdwg.mxu0
        %1615 = vst.msk [vmem:[%s257] sm:$0xff] %vm285, %v1610
        %s1616 = sand.u32 %s164, 1
        %s1617 = scalar_lea.sflag [#allocation3], %s1616
        %s1618 = sand.u32 %s164, 1
        %s1619 = smul.addr %s1618, 8
        %s1620 = scalar_lea.vmem [#allocation2], %s1619
        // Predicated region
        $region45: #{self_multihead_attention.1} parent=43 // pred_check
          %p1621 = pneg %p174
        $region46: #{self_multihead_attention.1} parent=43 // pred_check_branch
          %1623 = sbr.rel (%p1621) target = $region48
        $region47: #{self_multihead_attention.1} parent=43 // pred_region
          %s1625 = ssub.s32 128, 128
          %1626 = vsyncadd %s1617, %s1625
          %s1627 = smul.addr %s20, 128
          %s1628 = scalar_lea.hbm %s6, %s1627
          %s1630 = sshll.u32 %s1620, 4
          %s1631 = int_to_ptr.vmem [resolvable:$true] %s1630
          %1633 = dma.vmem_to_hbm [thread:$0]  %s1631, 128, %s1628, %s1617
        $region48: #{self_multihead_attention.1} parent=43 // pred_fallthru
          _
      $region44: #{self_multihead_attention.1} parent=5 // pred_fallthru
        _
      %p1634 = scmp.le.s32.totalorder 2, %s15
      // Predicated region
      $region49: #{self_multihead_attention.1} parent=5 // pred_check
        %p1635 = pneg %p1634
      $region50: #{self_multihead_attention.1} parent=5 // pred_check_branch
        %1637 = sbr.rel (%p1635) target = $region52
      $region51: #{self_multihead_attention.1} parent=5 // pred_region
        %s1638 = ssub.s32 %s15, 2
        // Predicated region
        $region53: #{self_multihead_attention.1} parent=51 // pred_check
          %p1639 = pneg %p180
        $region54: #{self_multihead_attention.1} parent=51 // pred_check_branch
          %1641 = sbr.rel (%p1639) target = $region56
        $region55: #{self_multihead_attention.1} parent=51 // pred_region
          %s1642 = sand.u32 %s165, 1
          %s1643 = scalar_lea.sflag [#allocation3], %s1642
          %s1644 = sand.u32 %s165, 1
          %s1645 = smul.addr %s1644, 8
          %s1646 = scalar_lea.vmem [#allocation2], %s1645
          %1647 = dma.done %s1643, 128
        $region56: #{self_multihead_attention.1} parent=51 // pred_fallthru
          _
      $region52: #{self_multihead_attention.1} parent=5 // pred_fallthru
        _
    $region6: #{self_multihead_attention.1} parent=1 // loop_footer
      %s19 = sadd.s32 1, %s15
    $region7: #{self_multihead_attention.1} parent=1 // loop_footer_branch
      %14 = sbr.rel target = $region3
    $region8: #{self_multihead_attention.1} parent=1 // loop_exit
      _
    %1648 = vsyncpa [#allocation3], 1
    %s1649 = scalar_lea.sflag [#allocation3], 1
    %1650 = vsyncpa %s1649, 1

</llo_original>
